<compile_context>
chip_gen: v5e
topology: v5e:2x2
jax: 0.10.0
libtpu: 0.0.40
codegen_flags: <defaults>
</compile_context>

<pallas_src>
import functools

import jax
import jax.numpy as jnp
from jax.experimental import pallas as pl
from jax.experimental.pallas import tpu as pltpu

EPS = 1e-5
_VMEM_LIMIT = 48 * 1024 * 1024     # safe on v5e/v6e (128 MiB physical) and v7x (64 MiB physical)


def _stats_kernel(up_ref, x_ref, wu_ref, bu_ref, wx_ref, bx_ref,
                  su_ref, sx_ref, *, compute_dtype):
    """Per-(batch, pixel-tile) partial BatchNorm statistics of ReLU(conv(.))."""
    # Transposed conv (k=2, s=2) as a k-major matmul: rows = (ki*2+kj)*up_out + co.
    y_up = jnp.dot(wu_ref[...], up_ref[0].astype(compute_dtype),
                   preferred_element_type=jnp.float32)
    y_up = jnp.maximum(y_up + bu_ref[...], 0.0)                       # (R_up, TP) f32
    # 1x1 conv.
    y_x = jnp.dot(wx_ref[...], x_ref[0].astype(compute_dtype),
                  preferred_element_type=jnp.float32)
    y_x = jnp.maximum(y_x + bx_ref[...], 0.0)                         # (x_out, 4*TP) f32
    # Partial (sum, sumsq) over the pixel (lane) axis; per-channel combine happens in the wrapper.
    su = jnp.concatenate([jnp.sum(y_up, axis=1, keepdims=True),
                          jnp.sum(y_up * y_up, axis=1, keepdims=True)], axis=1)
    sx = jnp.concatenate([jnp.sum(y_x, axis=1, keepdims=True),
                          jnp.sum(y_x * y_x, axis=1, keepdims=True)], axis=1)
    su_ref[...] = su[None, None]                                      # (1, 1, R_up, 2)
    sx_ref[...] = sx[None, None]                                      # (1, 1, x_out, 2)


def _norm_kernel(up_ref, x_ref, wu_ref, bu_ref, wx_ref, bx_ref,
                 scu_ref, shu_ref, scx_ref, shx_ref,
                 yu_ref, yx_ref, *, compute_dtype, out_dtype):
    """Recompute both branches (cheap) and apply the BatchNorm (scale, shift) affine."""
    y_up = jnp.dot(wu_ref[...], up_ref[0].astype(compute_dtype),
                   preferred_element_type=jnp.float32)
    y_up = jnp.maximum(y_up + bu_ref[...], 0.0)
    yu_ref[...] = (y_up * scu_ref[...] + shu_ref[...]).astype(out_dtype)[None]
    y_x = jnp.dot(wx_ref[...], x_ref[0].astype(compute_dtype),
                  preferred_element_type=jnp.float32)
    y_x = jnp.maximum(y_x + bx_ref[...], 0.0)
    yx_ref[...] = (y_x * scx_ref[...] + shx_ref[...]).astype(out_dtype)[None]


def _pick_tp(hw, bytes_per_pixel, budget=8 * 1024 * 1024):
    """Largest 128-multiple pixel tile dividing hw whose per-step working set fits the budget."""
    for tp in (8192, 4096, 2048, 1024, 512, 256, 128):
        if hw % tp == 0 and tp * bytes_per_pixel <= budget:
            return tp
    return hw   # whole image per grid step (full-extent block is always legal)


@functools.partial(jax.jit, static_argnames=("compute_dtype", "out_dtype"))
def unet_block_forward(up_p, x_p, params,
                       compute_dtype=jnp.bfloat16, out_dtype=jnp.bfloat16):
    """Pallas UnetBlock.forward: NCHW in -> NCHW out (channel order [tr_conv, x_conv])."""
    N, Cu, H, W = up_p.shape
    Nx, Cx, H2, W2 = x_p.shape
    assert N == Nx and H2 == 2 * H and W2 == 2 * W
    HW, HW2 = H * W, H2 * W2

    w_tr = params["w_tr"]                      # (Cu, up_out, 2, 2)  ConvTranspose2d layout
    w_x_p = params["w_x"]                      # (x_out, Cx, 1, 1)   Conv2d layout
    up_out, x_out = w_tr.shape[1], w_x_p.shape[0]
    R_up = 4 * up_out                          # k-major rows: (ki*2+kj)*up_out + co

    # ---- glue (cheap): pure reshapes; channels stay leading, pixels go to the lane axis ----
    up3 = up_p.reshape(N, Cu, HW)
    x3 = x_p.reshape(N, Cx, HW2)
    w_up = jnp.transpose(w_tr, (2, 3, 1, 0)).reshape(R_up, Cu).astype(compute_dtype)
    b_up = jnp.tile(params["b_tr"], 4).reshape(R_up, 1).astype(jnp.float32)
    w_x = w_x_p.reshape(x_out, Cx).astype(compute_dtype)
    b_x = params["b_x"].reshape(x_out, 1).astype(jnp.float32)

    out_isz = jnp.dtype(out_dtype).itemsize
    bytes_per_pixel = (2 * 4 * (Cu + 4 * Cx)               # double-buffered f32 input blocks
                       + 2 * out_isz * (R_up + 4 * x_out)  # double-buffered output blocks
                       + 8 * (R_up + 4 * x_out))           # in-kernel f32 activations
    TP = _pick_tp(HW, bytes_per_pixel)
    n_tiles = HW // TP
    grid = (N, n_tiles)

    up_spec = pl.BlockSpec((1, Cu, TP), lambda n, t: (n, 0, t))
    x_spec = pl.BlockSpec((1, Cx, 4 * TP), lambda n, t: (n, 0, t))
    wu_spec = pl.BlockSpec((R_up, Cu), lambda n, t: (0, 0))
    bu_spec = pl.BlockSpec((R_up, 1), lambda n, t: (0, 0))
    wx_spec = pl.BlockSpec((x_out, Cx), lambda n, t: (0, 0))
    bx_spec = pl.BlockSpec((x_out, 1), lambda n, t: (0, 0))

    cparams = pltpu.CompilerParams(
        dimension_semantics=("parallel", "parallel"),   # no carried state -> megacore-friendly
        vmem_limit_bytes=_VMEM_LIMIT)

    flops_mm = 2 * N * (HW * R_up * Cu + HW2 * x_out * Cx)
    in_bytes = up_p.dtype.itemsize * N * HW * Cu + x_p.dtype.itemsize * N * HW2 * Cx

    # ---- pass 1: per-(batch, tile) partial (sum, sumsq) of ReLU(conv(.)) ----
    su, sx = pl.pallas_call(
        functools.partial(_stats_kernel, compute_dtype=compute_dtype),
        grid=grid,
        in_specs=[up_spec, x_spec, wu_spec, bu_spec, wx_spec, bx_spec],
        out_specs=[pl.BlockSpec((1, 1, R_up, 2), lambda n, t: (n, t, 0, 0)),
                   pl.BlockSpec((1, 1, x_out, 2), lambda n, t: (n, t, 0, 0))],
        out_shape=[jax.ShapeDtypeStruct((N, n_tiles, R_up, 2), jnp.float32),
                   jax.ShapeDtypeStruct((N, n_tiles, x_out, 2), jnp.float32)],
        compiler_params=cparams,
        cost_estimate=pl.CostEstimate(
            flops=int(flops_mm), transcendentals=0,
            bytes_accessed=int(in_bytes + 4 * N * n_tiles * 2 * (R_up + x_out))),
    )(up3, x3, w_up, b_up, w_x, b_x)

    # ---- tiny f32 combine: (sum, sumsq) -> per-channel (scale, shift); biased var, eps=1e-5 ----
    # Note: E[x^2]-E[x]^2 in f32 can cancel for very large counts; clamp at 0 (Welford-style
    # combine would be the robust upgrade if accuracy at scale matters).
    count = float(N * HW2)                                     # BatchNorm2d count = N*H2*W2
    su = jnp.sum(su, axis=(0, 1))                              # (R_up, 2)
    sx = jnp.sum(sx, axis=(0, 1))                              # (x_out, 2)
    gamma = params["gamma"].astype(jnp.float32)
    beta = params["beta"].astype(jnp.float32)

    s_up = jnp.sum(su[:, 0].reshape(4, up_out), axis=0)        # fold the 4 k-positions
    q_up = jnp.sum(su[:, 1].reshape(4, up_out), axis=0)
    mean_up = s_up / count
    var_up = jnp.maximum(q_up / count - mean_up * mean_up, 0.0)
    scale_up = gamma[:up_out] * jax.lax.rsqrt(var_up + EPS)
    shift_up = beta[:up_out] - mean_up * scale_up
    scale_up_r = jnp.tile(scale_up, 4).reshape(R_up, 1)        # pre-tiled to the k-major rows
    shift_up_r = jnp.tile(shift_up, 4).reshape(R_up, 1)

    mean_x = sx[:, 0] / count
    var_x = jnp.maximum(sx[:, 1] / count - mean_x * mean_x, 0.0)
    scale_x = (gamma[up_out:] * jax.lax.rsqrt(var_x + EPS)).reshape(x_out, 1)
    shift_x = beta[up_out:].reshape(x_out, 1) - mean_x.reshape(x_out, 1) * scale_x

    # ---- pass 2: recompute and write lane-dense, unpadded bf16 normalized outputs ----
    yu, yx = pl.pallas_call(
        functools.partial(_norm_kernel, compute_dtype=compute_dtype, out_dtype=out_dtype),
        grid=grid,
        in_specs=[up_spec, x_spec, wu_spec, bu_spec, wx_spec, bx_spec,
                  bu_spec, bu_spec, bx_spec, bx_spec],        # scale/shift reuse the bias specs
        out_specs=[pl.BlockSpec((1, R_up, TP), lambda n, t: (n, 0, t)),
                   pl.BlockSpec((1, x_out, 4 * TP), lambda n, t: (n, 0, t))],
        out_shape=[jax.ShapeDtypeStruct((N, R_up, HW), out_dtype),
                   jax.ShapeDtypeStruct((N, x_out, HW2), out_dtype)],
        compiler_params=cparams,
        cost_estimate=pl.CostEstimate(
            flops=int(flops_mm + 2 * N * (HW * R_up + HW2 * x_out)), transcendentals=0,
            bytes_accessed=int(in_bytes + out_isz * N * (HW * R_up + HW2 * x_out))),
    )(up3, x3, w_up, b_up, w_x, b_x, scale_up_r, shift_up_r, scale_x, shift_x)

    # ---- glue: x branch is already NCHW; up branch needs one 6-D interleave transpose ----
    y_up = yu.reshape(N, 2, 2, up_out, H, W)                   # (n, ki, kj, co, i, j)
    y_up = jnp.transpose(y_up, (0, 3, 4, 1, 5, 2)).reshape(N, up_out, H2, W2)
    y_x = yx.reshape(N, x_out, H2, W2)
    return jnp.concatenate([y_up, y_x], axis=1)                # [tr_conv, x_conv] channel order


# ------------------------- pure-JAX reference (mirrors the PyTorch module) -------------------------
def unet_block_reference(up_p, x_p, params):
    w_tr, b_tr = params["w_tr"], params["b_tr"]
    w_x, b_x = params["w_x"], params["b_x"]
    gamma, beta = params["gamma"], params["beta"]
    N, _, H, W = up_p.shape
    up_out = w_tr.shape[1]
    x_out = w_x.shape[0]

    # PyTorch ConvTranspose2d(k=2, stride=2, padding=0):
    #   out[n, o, 2i+p, 2j+q] = sum_c in[n, c, i, j] * W[c, o, p, q] + b[o]
    up = jnp.einsum("ncij,copq->noipjq", up_p, w_tr).reshape(N, up_out, 2 * H, 2 * W)
    up = up + b_tr[None, :, None, None]
    xc = jnp.einsum("ncij,oc->noij", x_p, w_x.reshape(x_out, -1)) + b_x[None, :, None, None]

    cat = jnp.concatenate([up, xc], axis=1)
    r = jnp.maximum(cat, 0.0)
    mean = jnp.mean(r, axis=(0, 2, 3), keepdims=True)
    var = jnp.mean((r - mean) ** 2, axis=(0, 2, 3), keepdims=True)   # biased (training mode)
    xhat = (r - mean) / jnp.sqrt(var + EPS)
    return xhat * gamma[None, :, None, None] + beta[None, :, None, None]


if __name__ == "__main__":
    # small shapes: N=2, up_in=4, x_in=4, n_out=8, up spatial 16x16 -> output 32x32
    N, up_in, x_in, n_out = 2, 4, 4, 8
    H = W = 16
    up_out = x_out = n_out // 2

    key = jax.random.PRNGKey(0)
    k1, k2, k3, k4, k5, k6, k7, k8 = jax.random.split(key, 8)

    bt = 1.0 / (up_in * 4.0) ** 0.5        # PyTorch-style uniform(+-1/sqrt(fan_in)) bounds
    bx = 1.0 / float(x_in) ** 0.5
    params = {
        "w_tr": jax.random.uniform(k1, (up_in, up_out, 2, 2), jnp.float32, -bt, bt),
        "b_tr": jax.random.uniform(k2, (up_out,), jnp.float32, -bt, bt),
        "w_x": jax.random.uniform(k3, (x_out, x_in, 1, 1), jnp.float32, -bx, bx),
        "b_x": jax.random.uniform(k4, (x_out,), jnp.float32, -bx, bx),
        "gamma": jax.random.uniform(k7, (n_out,), jnp.float32, 0.5, 1.5),
        "beta": jax.random.uniform(k8, (n_out,), jnp.float32, -0.5, 0.5),
    }

    up_p = jax.random.normal(k5, (N, up_in, H, W), jnp.float32)
    x_p = jax.random.normal(k6, (N, x_in, 2 * H, 2 * W), jnp.float32)

    out = jax.block_until_ready(unet_block_forward(up_p, x_p, params))   # bf16 output by default
    assert out.shape == (N, n_out, 2 * H, 2 * W), out.shape
    out_f32 = out.astype(jnp.float32)

    # Tight semantic check: reference fed the same bf16-rounded matmul operands (bf16 x bf16 -> f32
    # products are exact), so the remaining error is f32 accumulation order + bf16 output rounding.
    params_r = dict(params)
    params_r["w_tr"] = params["w_tr"].astype(jnp.bfloat16).astype(jnp.float32)
    params_r["w_x"] = params["w_x"].astype(jnp.bfloat16).astype(jnp.float32)
    ref_b = unet_block_reference(up_p.astype(jnp.bfloat16).astype(jnp.float32),
                                 x_p.astype(jnp.bfloat16).astype(jnp.float32), params_r)
    rel_err = float(jnp.max(jnp.abs(out_f32 - ref_b) / (jnp.abs(ref_b) + 1.0)))
    assert rel_err < 1e-2, rel_err

    # Coarse sanity check vs the full-f32 reference (bf16 operand + output rounding, amplified by
    # the BatchNorm 1/sigma normalization, so compare in relative L2 rather than elementwise max).
    ref_f = unet_block_reference(up_p, x_p, params)
    rel_l2 = float(jnp.linalg.norm(out_f32 - ref_f) / jnp.linalg.norm(ref_f))
    assert rel_l2 < 5e-2, rel_l2

    print("KERNEL_OK")
</pallas_src>

<mosaic_0001>
module attributes {stable_mosaic.version = 11 : i64} {
  func.func @_stats_kernel(%arg0: i32, %arg1: i32, %arg2: memref<1x4x256xf32, #tpu.memory_space<vmem>>, %arg3: memref<1x4x1024xf32, #tpu.memory_space<vmem>>, %arg4: memref<16x4xbf16, #tpu.memory_space<vmem>>, %arg5: memref<16x1xf32, #tpu.memory_space<vmem>>, %arg6: memref<4x4xbf16, #tpu.memory_space<vmem>>, %arg7: memref<4x1xf32, #tpu.memory_space<vmem>>, %arg8: memref<1x1x16x2xf32, #tpu.memory_space<vmem>>, %arg9: memref<1x1x4x2xf32, #tpu.memory_space<vmem>>) attributes {dimension_semantics = [#tpu.dimension_semantics<parallel>, #tpu.dimension_semantics<parallel>], iteration_bounds = array<i64: 2, 1>, scalar_prefetch = 0 : i64, scratch_operands = 0 : i64, tpu.core_type = #tpu.core_type<tc>, window_params = [{transform_indices = @transform_0, window_bounds = array<i64: 1, 4, 256>}, {transform_indices = @transform_1, window_bounds = array<i64: 1, 4, 1024>}, {pipeline_mode = #tpu.pipeline_mode<synchronous>, transform_indices = @transform_2, window_bounds = array<i64: 16, 4>}, {pipeline_mode = #tpu.pipeline_mode<synchronous>, transform_indices = @transform_3, window_bounds = array<i64: 16, 1>}, {pipeline_mode = #tpu.pipeline_mode<synchronous>, transform_indices = @transform_4, window_bounds = array<i64: 4, 4>}, {pipeline_mode = #tpu.pipeline_mode<synchronous>, transform_indices = @transform_5, window_bounds = array<i64: 4, 1>}, {transform_indices = @transform_6, window_bounds = array<i64: 1, 1, 16, 2>}, {transform_indices = @transform_7, window_bounds = array<i64: 1, 1, 4, 2>}]} {
    %c0 = arith.constant 0 : index
    %c0_0 = arith.constant 0 : index
    %0 = vector.load %arg4[%c0, %c0_0] : memref<16x4xbf16, #tpu.memory_space<vmem>>, vector<16x4xbf16>
    %c0_1 = arith.constant 0 : index
    %c0_2 = arith.constant 0 : index
    %c0_3 = arith.constant 0 : index
    %1 = vector.load %arg2[%c0_1, %c0_2, %c0_3] : memref<1x4x256xf32, #tpu.memory_space<vmem>>, vector<1x4x256xf32>
    %2 = vector.shape_cast %1 : vector<1x4x256xf32> to vector<4x256xf32>
    %3 = arith.truncf %2 : vector<4x256xf32> to vector<4x256xbf16>
    %cst = arith.constant dense<0.000000e+00> : vector<16x256xf32>
    %4 = tpu.matmul %0, %3, %cst {dimension_numbers = #tpu.dot_dimension_numbers<[1], [0], [0], [1], [0, 0, 1, 1], [], []>} : vector<16x4xbf16>, vector<4x256xbf16>, vector<16x256xf32> -> vector<16x256xf32>
    %c0_4 = arith.constant 0 : index
    %c0_5 = arith.constant 0 : index
    %5 = vector.load %arg5[%c0_4, %c0_5] : memref<16x1xf32, #tpu.memory_space<vmem>>, vector<16x1xf32>
    %6 = vector.broadcast %5 : vector<16x1xf32> to vector<16x256xf32>
    %7 = arith.addf %4, %6 : vector<16x256xf32>
    %cst_6 = arith.constant 0.000000e+00 : f32
    %8 = vector.broadcast %cst_6 : f32 to vector<16x256xf32>
    %9 = arith.maximumf %7, %8 : vector<16x256xf32>
    %c0_7 = arith.constant 0 : index
    %c0_8 = arith.constant 0 : index
    %10 = vector.load %arg6[%c0_7, %c0_8] : memref<4x4xbf16, #tpu.memory_space<vmem>>, vector<4x4xbf16>
    %c0_9 = arith.constant 0 : index
    %c0_10 = arith.constant 0 : index
    %c0_11 = arith.constant 0 : index
    %11 = vector.load %arg3[%c0_9, %c0_10, %c0_11] : memref<1x4x1024xf32, #tpu.memory_space<vmem>>, vector<1x4x1024xf32>
    %12 = vector.shape_cast %11 : vector<1x4x1024xf32> to vector<4x1024xf32>
    %13 = arith.truncf %12 : vector<4x1024xf32> to vector<4x1024xbf16>
    %cst_12 = arith.constant dense<0.000000e+00> : vector<4x1024xf32>
    %14 = tpu.matmul %10, %13, %cst_12 {dimension_numbers = #tpu.dot_dimension_numbers<[1], [0], [0], [1], [0, 0, 1, 1], [], []>} : vector<4x4xbf16>, vector<4x1024xbf16>, vector<4x1024xf32> -> vector<4x1024xf32>
    %c0_13 = arith.constant 0 : index
    %c0_14 = arith.constant 0 : index
    %15 = vector.load %arg7[%c0_13, %c0_14] : memref<4x1xf32, #tpu.memory_space<vmem>>, vector<4x1xf32>
    %16 = vector.broadcast %15 : vector<4x1xf32> to vector<4x1024xf32>
    %17 = arith.addf %14, %16 : vector<4x1024xf32>
    %cst_15 = arith.constant 0.000000e+00 : f32
    %18 = vector.broadcast %cst_15 : f32 to vector<4x1024xf32>
    %19 = arith.maximumf %17, %18 : vector<4x1024xf32>
    %cst_16 = arith.constant dense<0.000000e+00> : vector<16xf32>
    %20 = vector.multi_reduction <add>, %9, %cst_16 [1] : vector<16x256xf32> to vector<16xf32>
    %21 = vector.shape_cast %20 : vector<16xf32> to vector<16x1xf32>
    %22 = arith.mulf %9, %9 : vector<16x256xf32>
    %cst_17 = arith.constant dense<0.000000e+00> : vector<16xf32>
    %23 = vector.multi_reduction <add>, %22, %cst_17 [1] : vector<16x256xf32> to vector<16xf32>
    %24 = vector.shape_cast %23 : vector<16xf32> to vector<16x1xf32>
    %25 = tpu.concatenate %21, %24 in 1 : vector<16x1xf32>, vector<16x1xf32> -> vector<16x2xf32>
    %cst_18 = arith.constant dense<0.000000e+00> : vector<4xf32>
    %26 = vector.multi_reduction <add>, %19, %cst_18 [1] : vector<4x1024xf32> to vector<4xf32>
    %27 = vector.shape_cast %26 : vector<4xf32> to vector<4x1xf32>
    %28 = arith.mulf %19, %19 : vector<4x1024xf32>
    %cst_19 = arith.constant dense<0.000000e+00> : vector<4xf32>
    %29 = vector.multi_reduction <add>, %28, %cst_19 [1] : vector<4x1024xf32> to vector<4xf32>
    %30 = vector.shape_cast %29 : vector<4xf32> to vector<4x1xf32>
    %31 = tpu.concatenate %27, %30 in 1 : vector<4x1xf32>, vector<4x1xf32> -> vector<4x2xf32>
    %32 = vector.shape_cast %25 : vector<16x2xf32> to vector<1x1x16x2xf32>
    %c0_20 = arith.constant 0 : index
    %c0_21 = arith.constant 0 : index
    %c0_22 = arith.constant 0 : index
    %c0_23 = arith.constant 0 : index
    %33 = vector.load %arg8[%c0_20, %c0_21, %c0_22, %c0_23] : memref<1x1x16x2xf32, #tpu.memory_space<vmem>>, vector<1x1x16x2xf32>
    tpu.vector_store %arg8[%c0_20, %c0_21, %c0_22, %c0_23], %32 {strides = array<i32>} : memref<1x1x16x2xf32, #tpu.memory_space<vmem>>, vector<1x1x16x2xf32>,
    %34 = vector.shape_cast %31 : vector<4x2xf32> to vector<1x1x4x2xf32>
    %c0_24 = arith.constant 0 : index
    %c0_25 = arith.constant 0 : index
    %c0_26 = arith.constant 0 : index
    %c0_27 = arith.constant 0 : index
    %35 = vector.load %arg9[%c0_24, %c0_25, %c0_26, %c0_27] : memref<1x1x4x2xf32, #tpu.memory_space<vmem>>, vector<1x1x4x2xf32>
    tpu.vector_store %arg9[%c0_24, %c0_25, %c0_26, %c0_27], %34 {strides = array<i32>} : memref<1x1x4x2xf32, #tpu.memory_space<vmem>>, vector<1x1x4x2xf32>,
    return
  }
  func.func @transform_0(%arg0: i32, %arg1: i32) -> (i32, i32, i32) {
    %c0_i32 = arith.constant 0 : i32
    %c0_i32_0 = arith.constant 0 : i32
    return %arg0, %c0_i32, %arg1 : i32, i32, i32
  }
  func.func @transform_1(%arg0: i32, %arg1: i32) -> (i32, i32, i32) {
    %c0_i32 = arith.constant 0 : i32
    %c0_i32_0 = arith.constant 0 : i32
    return %arg0, %c0_i32, %arg1 : i32, i32, i32
  }
  func.func @transform_2(%arg0: i32, %arg1: i32) -> (i32, i32) {
    %c0_i32 = arith.constant 0 : i32
    %c0_i32_0 = arith.constant 0 : i32
    %c0_i32_1 = arith.constant 0 : i32
    return %c0_i32, %c0_i32_0 : i32, i32
  }
  func.func @transform_3(%arg0: i32, %arg1: i32) -> (i32, i32) {
    %c0_i32 = arith.constant 0 : i32
    %c0_i32_0 = arith.constant 0 : i32
    %c0_i32_1 = arith.constant 0 : i32
    return %c0_i32, %c0_i32_0 : i32, i32
  }
  func.func @transform_4(%arg0: i32, %arg1: i32) -> (i32, i32) {
    %c0_i32 = arith.constant 0 : i32
    %c0_i32_0 = arith.constant 0 : i32
    %c0_i32_1 = arith.constant 0 : i32
    return %c0_i32, %c0_i32_0 : i32, i32
  }
  func.func @transform_5(%arg0: i32, %arg1: i32) -> (i32, i32) {
    %c0_i32 = arith.constant 0 : i32
    %c0_i32_0 = arith.constant 0 : i32
    %c0_i32_1 = arith.constant 0 : i32
    return %c0_i32, %c0_i32_0 : i32, i32
  }
  func.func @transform_6(%arg0: i32, %arg1: i32) -> (i32, i32, i32, i32) {
    %c0_i32 = arith.constant 0 : i32
    %c0_i32_0 = arith.constant 0 : i32
    %c0_i32_1 = arith.constant 0 : i32
    return %arg0, %arg1, %c0_i32, %c0_i32_0 : i32, i32, i32, i32
  }
  func.func @transform_7(%arg0: i32, %arg1: i32) -> (i32, i32, i32, i32) {
    %c0_i32 = arith.constant 0 : i32
    %c0_i32_0 = arith.constant 0 : i32
    %c0_i32_1 = arith.constant 0 : i32
    return %arg0, %arg1, %c0_i32, %c0_i32_0 : i32, i32, i32, i32
  }
}

module attributes {stable_mosaic.version = 11 : i64} {
  func.func @_norm_kernel(%arg0: i32, %arg1: i32, %arg2: memref<1x4x256xf32, #tpu.memory_space<vmem>>, %arg3: memref<1x4x1024xf32, #tpu.memory_space<vmem>>, %arg4: memref<16x4xbf16, #tpu.memory_space<vmem>>, %arg5: memref<16x1xf32, #tpu.memory_space<vmem>>, %arg6: memref<4x4xbf16, #tpu.memory_space<vmem>>, %arg7: memref<4x1xf32, #tpu.memory_space<vmem>>, %arg8: memref<16x1xf32, #tpu.memory_space<vmem>>, %arg9: memref<16x1xf32, #tpu.memory_space<vmem>>, %arg10: memref<4x1xf32, #tpu.memory_space<vmem>>, %arg11: memref<4x1xf32, #tpu.memory_space<vmem>>, %arg12: memref<1x16x256xbf16, #tpu.memory_space<vmem>>, %arg13: memref<1x4x1024xbf16, #tpu.memory_space<vmem>>) attributes {dimension_semantics = [#tpu.dimension_semantics<parallel>, #tpu.dimension_semantics<parallel>], iteration_bounds = array<i64: 2, 1>, scalar_prefetch = 0 : i64, scratch_operands = 0 : i64, tpu.core_type = #tpu.core_type<tc>, window_params = [{transform_indices = @transform_0, window_bounds = array<i64: 1, 4, 256>}, {transform_indices = @transform_1, window_bounds = array<i64: 1, 4, 1024>}, {pipeline_mode = #tpu.pipeline_mode<synchronous>, transform_indices = @transform_2, window_bounds = array<i64: 16, 4>}, {pipeline_mode = #tpu.pipeline_mode<synchronous>, transform_indices = @transform_3, window_bounds = array<i64: 16, 1>}, {pipeline_mode = #tpu.pipeline_mode<synchronous>, transform_indices = @transform_4, window_bounds = array<i64: 4, 4>}, {pipeline_mode = #tpu.pipeline_mode<synchronous>, transform_indices = @transform_5, window_bounds = array<i64: 4, 1>}, {pipeline_mode = #tpu.pipeline_mode<synchronous>, transform_indices = @transform_6, window_bounds = array<i64: 16, 1>}, {pipeline_mode = #tpu.pipeline_mode<synchronous>, transform_indices = @transform_7, window_bounds = array<i64: 16, 1>}, {pipeline_mode = #tpu.pipeline_mode<synchronous>, transform_indices = @transform_8, window_bounds = array<i64: 4, 1>}, {pipeline_mode = #tpu.pipeline_mode<synchronous>, transform_indices = @transform_9, window_bounds = array<i64: 4, 1>}, {transform_indices = @transform_10, window_bounds = array<i64: 1, 16, 256>}, {transform_indices = @transform_11, window_bounds = array<i64: 1, 4, 1024>}]} {
    %c0 = arith.constant 0 : index
    %c0_0 = arith.constant 0 : index
    %0 = vector.load %arg4[%c0, %c0_0] : memref<16x4xbf16, #tpu.memory_space<vmem>>, vector<16x4xbf16>
    %c0_1 = arith.constant 0 : index
    %c0_2 = arith.constant 0 : index
    %c0_3 = arith.constant 0 : index
    %1 = vector.load %arg2[%c0_1, %c0_2, %c0_3] : memref<1x4x256xf32, #tpu.memory_space<vmem>>, vector<1x4x256xf32>
    %2 = vector.shape_cast %1 : vector<1x4x256xf32> to vector<4x256xf32>
    %3 = arith.truncf %2 : vector<4x256xf32> to vector<4x256xbf16>
    %cst = arith.constant dense<0.000000e+00> : vector<16x256xf32>
    %4 = tpu.matmul %0, %3, %cst {dimension_numbers = #tpu.dot_dimension_numbers<[1], [0], [0], [1], [0, 0, 1, 1], [], []>} : vector<16x4xbf16>, vector<4x256xbf16>, vector<16x256xf32> -> vector<16x256xf32>
    %c0_4 = arith.constant 0 : index
    %c0_5 = arith.constant 0 : index
    %5 = vector.load %arg5[%c0_4, %c0_5] : memref<16x1xf32, #tpu.memory_space<vmem>>, vector<16x1xf32>
    %6 = vector.broadcast %5 : vector<16x1xf32> to vector<16x256xf32>
    %7 = arith.addf %4, %6 : vector<16x256xf32>
    %cst_6 = arith.constant 0.000000e+00 : f32
    %8 = vector.broadcast %cst_6 : f32 to vector<16x256xf32>
    %9 = arith.maximumf %7, %8 : vector<16x256xf32>
    %c0_7 = arith.constant 0 : index
    %c0_8 = arith.constant 0 : index
    %10 = vector.load %arg8[%c0_7, %c0_8] : memref<16x1xf32, #tpu.memory_space<vmem>>, vector<16x1xf32>
    %11 = vector.broadcast %10 : vector<16x1xf32> to vector<16x256xf32>
    %12 = arith.mulf %9, %11 : vector<16x256xf32>
    %c0_9 = arith.constant 0 : index
    %c0_10 = arith.constant 0 : index
    %13 = vector.load %arg9[%c0_9, %c0_10] : memref<16x1xf32, #tpu.memory_space<vmem>>, vector<16x1xf32>
    %14 = vector.broadcast %13 : vector<16x1xf32> to vector<16x256xf32>
    %15 = arith.addf %12, %14 : vector<16x256xf32>
    %16 = arith.truncf %15 : vector<16x256xf32> to vector<16x256xbf16>
    %17 = vector.shape_cast %16 : vector<16x256xbf16> to vector<1x16x256xbf16>
    %c0_11 = arith.constant 0 : index
    %c0_12 = arith.constant 0 : index
    %c0_13 = arith.constant 0 : index
    %18 = vector.load %arg12[%c0_11, %c0_12, %c0_13] : memref<1x16x256xbf16, #tpu.memory_space<vmem>>, vector<1x16x256xbf16>
    tpu.vector_store %arg12[%c0_11, %c0_12, %c0_13], %17 {strides = array<i32>} : memref<1x16x256xbf16, #tpu.memory_space<vmem>>, vector<1x16x256xbf16>,
    %c0_14 = arith.constant 0 : index
    %c0_15 = arith.constant 0 : index
    %19 = vector.load %arg6[%c0_14, %c0_15] : memref<4x4xbf16, #tpu.memory_space<vmem>>, vector<4x4xbf16>
    %c0_16 = arith.constant 0 : index
    %c0_17 = arith.constant 0 : index
    %c0_18 = arith.constant 0 : index
    %20 = vector.load %arg3[%c0_16, %c0_17, %c0_18] : memref<1x4x1024xf32, #tpu.memory_space<vmem>>, vector<1x4x1024xf32>
    %21 = vector.shape_cast %20 : vector<1x4x1024xf32> to vector<4x1024xf32>
    %22 = arith.truncf %21 : vector<4x1024xf32> to vector<4x1024xbf16>
    %cst_19 = arith.constant dense<0.000000e+00> : vector<4x1024xf32>
    %23 = tpu.matmul %19, %22, %cst_19 {dimension_numbers = #tpu.dot_dimension_numbers<[1], [0], [0], [1], [0, 0, 1, 1], [], []>} : vector<4x4xbf16>, vector<4x1024xbf16>, vector<4x1024xf32> -> vector<4x1024xf32>
    %c0_20 = arith.constant 0 : index
    %c0_21 = arith.constant 0 : index
    %24 = vector.load %arg7[%c0_20, %c0_21] : memref<4x1xf32, #tpu.memory_space<vmem>>, vector<4x1xf32>
    %25 = vector.broadcast %24 : vector<4x1xf32> to vector<4x1024xf32>
    %26 = arith.addf %23, %25 : vector<4x1024xf32>
    %cst_22 = arith.constant 0.000000e+00 : f32
    %27 = vector.broadcast %cst_22 : f32 to vector<4x1024xf32>
    %28 = arith.maximumf %26, %27 : vector<4x1024xf32>
    %c0_23 = arith.constant 0 : index
    %c0_24 = arith.constant 0 : index
    %29 = vector.load %arg10[%c0_23, %c0_24] : memref<4x1xf32, #tpu.memory_space<vmem>>, vector<4x1xf32>
    %30 = vector.broadcast %29 : vector<4x1xf32> to vector<4x1024xf32>
    %31 = arith.mulf %28, %30 : vector<4x1024xf32>
    %c0_25 = arith.constant 0 : index
    %c0_26 = arith.constant 0 : index
    %32 = vector.load %arg11[%c0_25, %c0_26] : memref<4x1xf32, #tpu.memory_space<vmem>>, vector<4x1xf32>
    %33 = vector.broadcast %32 : vector<4x1xf32> to vector<4x1024xf32>
    %34 = arith.addf %31, %33 : vector<4x1024xf32>
    %35 = arith.truncf %34 : vector<4x1024xf32> to vector<4x1024xbf16>
    %36 = vector.shape_cast %35 : vector<4x1024xbf16> to vector<1x4x1024xbf16>
    %c0_27 = arith.constant 0 : index
    %c0_28 = arith.constant 0 : index
    %c0_29 = arith.constant 0 : index
    %37 = vector.load %arg13[%c0_27, %c0_28, %c0_29] : memref<1x4x1024xbf16, #tpu.memory_space<vmem>>, vector<1x4x1024xbf16>
    tpu.vector_store %arg13[%c0_27, %c0_28, %c0_29], %36 {strides = array<i32>} : memref<1x4x1024xbf16, #tpu.memory_space<vmem>>, vector<1x4x1024xbf16>,
    return
  }
  func.func @transform_0(%arg0: i32, %arg1: i32) -> (i32, i32, i32) {
    %c0_i32 = arith.constant 0 : i32
    %c0_i32_0 = arith.constant 0 : i32
    return %arg0, %c0_i32, %arg1 : i32, i32, i32
  }
  func.func @transform_1(%arg0: i32, %arg1: i32) -> (i32, i32, i32) {
    %c0_i32 = arith.constant 0 : i32
    %c0_i32_0 = arith.constant 0 : i32
    return %arg0, %c0_i32, %arg1 : i32, i32, i32
  }
  func.func @transform_2(%arg0: i32, %arg1: i32) -> (i32, i32) {
    %c0_i32 = arith.constant 0 : i32
    %c0_i32_0 = arith.constant 0 : i32
    %c0_i32_1 = arith.constant 0 : i32
    return %c0_i32, %c0_i32_0 : i32, i32
  }
  func.func @transform_3(%arg0: i32, %arg1: i32) -> (i32, i32) {
    %c0_i32 = arith.constant 0 : i32
    %c0_i32_0 = arith.constant 0 : i32
    %c0_i32_1 = arith.constant 0 : i32
    return %c0_i32, %c0_i32_0 : i32, i32
  }
  func.func @transform_4(%arg0: i32, %arg1: i32) -> (i32, i32) {
    %c0_i32 = arith.constant 0 : i32
    %c0_i32_0 = arith.constant 0 : i32
    %c0_i32_1 = arith.constant 0 : i32
    return %c0_i32, %c0_i32_0 : i32, i32
  }
  func.func @transform_5(%arg0: i32, %arg1: i32) -> (i32, i32) {
    %c0_i32 = arith.constant 0 : i32
    %c0_i32_0 = arith.constant 0 : i32
    %c0_i32_1 = arith.constant 0 : i32
    return %c0_i32, %c0_i32_0 : i32, i32
  }
  func.func @transform_6(%arg0: i32, %arg1: i32) -> (i32, i32) {
    %c0_i32 = arith.constant 0 : i32
    %c0_i32_0 = arith.constant 0 : i32
    %c0_i32_1 = arith.constant 0 : i32
    return %c0_i32, %c0_i32_0 : i32, i32
  }
  func.func @transform_7(%arg0: i32, %arg1: i32) -> (i32, i32) {
    %c0_i32 = arith.constant 0 : i32
    %c0_i32_0 = arith.constant 0 : i32
    %c0_i32_1 = arith.constant 0 : i32
    return %c0_i32, %c0_i32_0 : i32, i32
  }
  func.func @transform_8(%arg0: i32, %arg1: i32) -> (i32, i32) {
    %c0_i32 = arith.constant 0 : i32
    %c0_i32_0 = arith.constant 0 : i32
    %c0_i32_1 = arith.constant 0 : i32
    return %c0_i32, %c0_i32_0 : i32, i32
  }
  func.func @transform_9(%arg0: i32, %arg1: i32) -> (i32, i32) {
    %c0_i32 = arith.constant 0 : i32
    %c0_i32_0 = arith.constant 0 : i32
    %c0_i32_1 = arith.constant 0 : i32
    return %c0_i32, %c0_i32_0 : i32, i32
  }
  func.func @transform_10(%arg0: i32, %arg1: i32) -> (i32, i32, i32) {
    %c0_i32 = arith.constant 0 : i32
    %c0_i32_0 = arith.constant 0 : i32
    return %arg0, %c0_i32, %arg1 : i32, i32, i32
  }
  func.func @transform_11(%arg0: i32, %arg1: i32) -> (i32, i32, i32) {
    %c0_i32 = arith.constant 0 : i32
    %c0_i32_0 = arith.constant 0 : i32
    return %arg0, %c0_i32, %arg1 : i32, i32, i32
  }
}

</mosaic_0001>

<llo_original>
// kernel: tile.18
$region0: #{tile.18}
  #allocation0 [shape = 's32[1]{0}', space=sflag, size = 0x4, scoped, tag = 'scoped memory for tile.18']
  %s0 = inlined_call_operand.vmem [shape: f32[4], index: 0, kind: input, shape index: {}]
  %s1 = inlined_call_operand.vmem [shape: f32[4,4], index: 1, kind: output, shape index: {}]
  // Predicated region
  $region2: #{tile.18} parent=0 // pred_check
    _
  $region3: #{tile.18} parent=0 // pred_check_branch
    %3 = sbr.rel (0) target = $region5
  $region4: #{tile.18} parent=0 // pred_region
    _
  $region5: #{tile.18} parent=0 // pred_fallthru
    _
  %v4 = vld [vmem:[%s0] ss:$0 sm:$0xff]
  %5 = vst [vmem:[%s1] sm:$0xf] %v4

// kernel: tile.0
$region0: #{tile.0}
  %s0 = inlined_call_operand.vmem [shape: f32[4,4], index: 0, kind: input, shape index: {}]
  %s1 = inlined_call_operand.vmem [shape: f32[16,1], index: 1, kind: output, shape index: {}]
  $region1: #{tile.0} parent=0
    #allocation0 [shape = 'u8[4096]{0}', space=vmem, size = 0x1000, scoped, tag = 'scoped mem for input reshape']
    %s3 = ssub.s32 16, 1
    %v4 = vld [vmem:[%s0] sm:%s3]
    %5 = vst [vmem:[#allocation0] sm:%s3] %v4
    %v6 = vld [vmem:[#allocation0] sm:$0xf]
    %vm7 = vcmask 7168
    %8 = vst.msk [vmem:[%s1] ss:$4 sm:$0xf] %vm7, %v6
    %v9 = vld [vmem:[#allocation0] sm:$0xf]
    %10 = vrot.lane.b32.xlu0 %v9, 127
    %v11 = vpop.permute.xlu0 %10
    %vm12 = vcmask 7168
    %s13 = scalar_lea.vmem %s1, 1
    %14 = vst.msk [vmem:[%s13] ss:$4 sm:$0xf] %vm12, %v11
    %v15 = vld [vmem:[#allocation0] sm:$0xf]
    %16 = vrot.lane.b32.xlu0 %v15, 126
    %v17 = vpop.permute.xlu0 %16
    %vm18 = vcmask 7168
    %s19 = scalar_lea.vmem %s1, 2
    %20 = vst.msk [vmem:[%s19] ss:$4 sm:$0xf] %vm18, %v17
    %v21 = vld [vmem:[#allocation0] sm:$0xf]
    %22 = vrot.lane.b32.xlu0 %v21, 125
    %v23 = vpop.permute.xlu0 %22
    %vm24 = vcmask 7168
    %s25 = scalar_lea.vmem %s1, 3
    %26 = vst.msk [vmem:[%s25] ss:$4 sm:$0xf] %vm24, %v23

// kernel: squeeze.4
$region0: #{squeeze.4}
  %s0 = inlined_call_operand.vmem [shape: f32[16], index: 0, kind: input, shape index: {}]
  %s1 = inlined_call_operand.vmem [shape: f32[4,4], index: 1, kind: output, shape index: {}]
  $region1: #{squeeze.4} parent=0
    #allocation0 [shape = 'u8[4096]{0}', space=vmem, size = 0x1000, scoped, tag = 'scoped mem for output reshape']
    #allocation1 [shape = 'u8[4096]{0}', space=vmem, size = 0x1000, scoped, tag = 'scoped mem for input reshape']
    %s3 = ssub.s32 2, 1
    %v4 = vld [vmem:[%s0] sm:%s3]
    %5 = vst [vmem:[#allocation1] sm:%s3] %v4
    %v6 = vld [vmem:[#allocation1] sm:$0x1]
    %vm7 = vcmask 31744
    %8 = vst.msk [vmem:[#allocation0] sm:$0x1] %vm7, %v6
    %v9 = vld [vmem:[#allocation1] sm:$0x1]
    %10 = vrot.lane.b32.xlu0 %v9, 124
    %v11 = vpop.permute.xlu0 %10
    %vm12 = vcmask 31744
    %s13 = scalar_lea.vmem [#allocation0], 1
    %14 = vst.msk [vmem:[%s13] sm:$0x1] %vm12, %v11
    %v15 = vld [vmem:[#allocation1] sm:$0x1]
    %16 = vrot.lane.b32.xlu0 %v15, 120
    %v17 = vpop.permute.xlu0 %16
    %vm18 = vcmask 31744
    %s19 = scalar_lea.vmem [#allocation0], 2
    %20 = vst.msk [vmem:[%s19] sm:$0x1] %vm18, %v17
    %v21 = vld [vmem:[#allocation1] sm:$0x1]
    %22 = vrot.lane.b32.xlu0 %v21, 116
    %v23 = vpop.permute.xlu0 %22
    %vm24 = vcmask 31744
    %s25 = scalar_lea.vmem [#allocation0], 3
    %26 = vst.msk [vmem:[%s25] sm:$0x1] %vm24, %v23
    %s28 = ssub.s32 16, 1
    %v29 = vld [vmem:[#allocation0] sm:%s28]
    %s31 = ssub.s32 16, 1
    %32 = vst [vmem:[%s1] sm:%s31] %v29

// kernel: unet_block_forward.2
$region0: #{unet_block_forward.2}
  #allocation0 [shape = 'u32[]', space=smem, size = 0x4, offset = 0x4, fixed_abs, tag = 'smem constant byte address 0x4 - core index']
  #allocation1 [shape = 'u32[72,128]{1,0:T(1,128)}', space=vmem, size = 0x9000, scoped, tag = 'internal scratch']
  %s0 = inlined_call_operand.vmem [shape: f32[2,4,256], index: 0, kind: input, shape index: {}]
  %s1 = inlined_call_operand.vmem [shape: f32[2,4,1024], index: 1, kind: input, shape index: {}]
  %s2 = inlined_call_operand.vmem [shape: bf16[16,4], index: 2, kind: input, shape index: {}]
  %s3 = inlined_call_operand.vmem [shape: f32[16,1], index: 3, kind: input, shape index: {}]
  %s4 = inlined_call_operand.vmem [shape: bf16[4,4], index: 4, kind: input, shape index: {}]
  %s5 = inlined_call_operand.vmem [shape: f32[4,1], index: 5, kind: input, shape index: {}]
  %s6 = inlined_call_operand.vmem [shape: f32[2,1,16,2], index: 6, kind: output, shape index: {0}]
  %s7 = inlined_call_operand.vmem [shape: f32[2,1,4,2], index: 7, kind: output, shape index: {1}]
  %8 = xla_tuple %s6, %s7
  %s9 = sld [smem:[#allocation0]]
  $region65: #{unet_block_forward.2} parent=0
    _
  %s11 = ssub.s32 1, %s9
  %s12 = scalar_select 0, %s11, %s9
  loop: start=0, step=1, limit=4
  $region2: #{unet_block_forward.2} parent=0 // loop_pre_header
    _
  $region3: #{unet_block_forward.2} parent=0 // loop_header
    %s14 = sphi 0, %s18
    %p15 = scmp.ge.s32.totalorder %s14, 4
    %s21 = sphi 0, %s33
    %s22 = sphi 0, %s29
    %s23 = sphi 0, %s21
    %s24 = sphi 0, %s22
    %s25 = sphi 0, %s23
    %s26 = sphi 0, %s24
    %s38 = sphi 0, %s40
    %s41 = sphi 0, %s38
    %s42 = sphi 0, %s41
    %s58 = sphi 0, %s42
    %s66 = sphi 0, %s68
    %s69 = sphi 0, %s66
    %s70 = sphi 0, %s69
    %s86 = sphi 0, %s70
    %s90 = sphi 0, %s90
    %s92 = sphi 0, %s90
    %s93 = sphi 0, %s92
    %s107 = sphi 0, %s93
    %s111 = sphi 0, %s111
    %s113 = sphi 0, %s111
    %s114 = sphi 0, %s113
    %s128 = sphi 0, %s114
    %s132 = sphi 0, %s132
    %s134 = sphi 0, %s132
    %s135 = sphi 0, %s134
    %s149 = sphi 0, %s135
    %s153 = sphi 0, %s153
    %s155 = sphi 0, %s153
    %s156 = sphi 0, %s155
    %s170 = sphi 0, %s156
    %s178 = sphi 0, %s180
    %s181 = sphi 0, %s178
    %s182 = sphi 0, %s181
    %s198 = sphi 0, %s182
    %s206 = sphi 0, %s208
    %s209 = sphi 0, %s206
    %s210 = sphi 0, %s209
    %s226 = sphi 0, %s210
  $region4: #{unet_block_forward.2} parent=0 // loop_header_branch
    %17 = sbr.rel (%p15) target = $region8
  $region5: #{unet_block_forward.2} parent=0 // loop_body
    %s19 = ssub.s32 %s14, 1
    %s20 = ssub.s32 %s14, 2
    %s27 = sadd.s32 1, %s22
    %p28 = scmp.ge.s32.totalorder %s27, 1
    %s29 = scalar_select %p28, 0, %s27
    %s30 = sadd.s32 1, %s21
    %s31 = scalar_select %p28, %s30, %s21
    %p32 = scmp.ge.s32.totalorder %s31, 2
    %s33 = scalar_select %p32, 0, %s31
    %s34 = ssub.s32 %s21, %s33
    %s35 = ssub.s32 %s22, %s29
    %s36 = sor.u32 %s34, %s35
    %p37 = scmp.eq.s32.totalorder %s36, 0
    %s39 = sadd.s32 %s38, 1
    %s40 = scalar_select %p37, %s38, %s39
    %p43 = pneg %p37
    %p44 = scmp.eq.s32.totalorder %s14, 1
    %p45 = por %p43, %p44
    %p46 = scmp.ne.s32.totalorder %s38, %s41
    %p47 = scmp.eq.s32.totalorder %s14, 0
    %p48 = por %p46, %p47
    %p49 = scmp.ne.s32.totalorder %s38, %s41
    %p50 = scmp.eq.s32.totalorder %s19, 1
    %p51 = por %p49, %p50
    %p52 = scmp.ne.s32.totalorder %s41, %s42
    %p53 = scmp.eq.s32.totalorder %s19, 0
    %p54 = por %p52, %p53
    %p55 = scmp.ne.s32.totalorder %s41, %s42
    %p56 = scmp.eq.s32.totalorder %s20, 1
    %p57 = por %p55, %p56
    %p59 = scmp.ne.s32.totalorder %s42, %s58
    %p60 = scmp.eq.s32.totalorder %s20, 0
    %p61 = por %p59, %p60
    %s62 = ssub.s32 %s21, %s33
    %s63 = ssub.s32 %s22, %s29
    %s64 = sor.u32 %s62, %s63
    %p65 = scmp.eq.s32.totalorder %s64, 0
    %s67 = sadd.s32 %s66, 1
    %s68 = scalar_select %p65, %s66, %s67
    %p71 = pneg %p65
    %p72 = scmp.eq.s32.totalorder %s14, 1
    %p73 = por %p71, %p72
    %p74 = scmp.ne.s32.totalorder %s66, %s69
    %p75 = scmp.eq.s32.totalorder %s14, 0
    %p76 = por %p74, %p75
    %p77 = scmp.ne.s32.totalorder %s66, %s69
    %p78 = scmp.eq.s32.totalorder %s19, 1
    %p79 = por %p77, %p78
    %p80 = scmp.ne.s32.totalorder %s69, %s70
    %p81 = scmp.eq.s32.totalorder %s19, 0
    %p82 = por %p80, %p81
    %p83 = scmp.ne.s32.totalorder %s69, %s70
    %p84 = scmp.eq.s32.totalorder %s20, 1
    %p85 = por %p83, %p84
    %p87 = scmp.ne.s32.totalorder %s70, %s86
    %p88 = scmp.eq.s32.totalorder %s20, 0
    %p89 = por %p87, %p88
    %s91 = sadd.s32 %s90, 1
    %p94 = scmp.eq.s32.totalorder %s14, 1
    %p95 = scmp.ne.s32.totalorder %s90, %s92
    %p96 = scmp.eq.s32.totalorder %s14, 0
    %p97 = por %p95, %p96
    %p98 = scmp.ne.s32.totalorder %s90, %s92
    %p99 = scmp.eq.s32.totalorder %s19, 1
    %p100 = por %p98, %p99
    %p101 = scmp.ne.s32.totalorder %s92, %s93
    %p102 = scmp.eq.s32.totalorder %s19, 0
    %p103 = por %p101, %p102
    %p104 = scmp.ne.s32.totalorder %s92, %s93
    %p105 = scmp.eq.s32.totalorder %s20, 1
    %p106 = por %p104, %p105
    %p108 = scmp.ne.s32.totalorder %s93, %s107
    %p109 = scmp.eq.s32.totalorder %s20, 0
    %p110 = por %p108, %p109
    %s112 = sadd.s32 %s111, 1
    %p115 = scmp.eq.s32.totalorder %s14, 1
    %p116 = scmp.ne.s32.totalorder %s111, %s113
    %p117 = scmp.eq.s32.totalorder %s14, 0
    %p118 = por %p116, %p117
    %p119 = scmp.ne.s32.totalorder %s111, %s113
    %p120 = scmp.eq.s32.totalorder %s19, 1
    %p121 = por %p119, %p120
    %p122 = scmp.ne.s32.totalorder %s113, %s114
    %p123 = scmp.eq.s32.totalorder %s19, 0
    %p124 = por %p122, %p123
    %p125 = scmp.ne.s32.totalorder %s113, %s114
    %p126 = scmp.eq.s32.totalorder %s20, 1
    %p127 = por %p125, %p126
    %p129 = scmp.ne.s32.totalorder %s114, %s128
    %p130 = scmp.eq.s32.totalorder %s20, 0
    %p131 = por %p129, %p130
    %s133 = sadd.s32 %s132, 1
    %p136 = scmp.eq.s32.totalorder %s14, 1
    %p137 = scmp.ne.s32.totalorder %s132, %s134
    %p138 = scmp.eq.s32.totalorder %s14, 0
    %p139 = por %p137, %p138
    %p140 = scmp.ne.s32.totalorder %s132, %s134
    %p141 = scmp.eq.s32.totalorder %s19, 1
    %p142 = por %p140, %p141
    %p143 = scmp.ne.s32.totalorder %s134, %s135
    %p144 = scmp.eq.s32.totalorder %s19, 0
    %p145 = por %p143, %p144
    %p146 = scmp.ne.s32.totalorder %s134, %s135
    %p147 = scmp.eq.s32.totalorder %s20, 1
    %p148 = por %p146, %p147
    %p150 = scmp.ne.s32.totalorder %s135, %s149
    %p151 = scmp.eq.s32.totalorder %s20, 0
    %p152 = por %p150, %p151
    %s154 = sadd.s32 %s153, 1
    %p157 = scmp.eq.s32.totalorder %s14, 1
    %p158 = scmp.ne.s32.totalorder %s153, %s155
    %p159 = scmp.eq.s32.totalorder %s14, 0
    %p160 = por %p158, %p159
    %p161 = scmp.ne.s32.totalorder %s153, %s155
    %p162 = scmp.eq.s32.totalorder %s19, 1
    %p163 = por %p161, %p162
    %p164 = scmp.ne.s32.totalorder %s155, %s156
    %p165 = scmp.eq.s32.totalorder %s19, 0
    %p166 = por %p164, %p165
    %p167 = scmp.ne.s32.totalorder %s155, %s156
    %p168 = scmp.eq.s32.totalorder %s20, 1
    %p169 = por %p167, %p168
    %p171 = scmp.ne.s32.totalorder %s156, %s170
    %p172 = scmp.eq.s32.totalorder %s20, 0
    %p173 = por %p171, %p172
    %s174 = ssub.s32 %s21, %s33
    %s175 = ssub.s32 %s22, %s29
    %s176 = sor.u32 %s174, %s175
    %p177 = scmp.eq.s32.totalorder %s176, 0
    %s179 = sadd.s32 %s178, 1
    %s180 = scalar_select %p177, %s178, %s179
    %p183 = pneg %p177
    %p184 = scmp.eq.s32.totalorder %s14, 1
    %p185 = por %p183, %p184
    %p186 = scmp.ne.s32.totalorder %s178, %s181
    %p187 = scmp.eq.s32.totalorder %s14, 0
    %p188 = por %p186, %p187
    %p189 = scmp.ne.s32.totalorder %s178, %s181
    %p190 = scmp.eq.s32.totalorder %s19, 1
    %p191 = por %p189, %p190
    %p192 = scmp.ne.s32.totalorder %s181, %s182
    %p193 = scmp.eq.s32.totalorder %s19, 0
    %p194 = por %p192, %p193
    %p195 = scmp.ne.s32.totalorder %s181, %s182
    %p196 = scmp.eq.s32.totalorder %s20, 1
    %p197 = por %p195, %p196
    %p199 = scmp.ne.s32.totalorder %s182, %s198
    %p200 = scmp.eq.s32.totalorder %s20, 0
    %p201 = por %p199, %p200
    %s202 = ssub.s32 %s21, %s33
    %s203 = ssub.s32 %s22, %s29
    %s204 = sor.u32 %s202, %s203
    %p205 = scmp.eq.s32.totalorder %s204, 0
    %s207 = sadd.s32 %s206, 1
    %s208 = scalar_select %p205, %s206, %s207
    %p211 = pneg %p205
    %p212 = scmp.eq.s32.totalorder %s14, 1
    %p213 = por %p211, %p212
    %p214 = scmp.ne.s32.totalorder %s206, %s209
    %p215 = scmp.eq.s32.totalorder %s14, 0
    %p216 = por %p214, %p215
    %p217 = scmp.ne.s32.totalorder %s206, %s209
    %p218 = scmp.eq.s32.totalorder %s19, 1
    %p219 = por %p217, %p218
    %p220 = scmp.ne.s32.totalorder %s209, %s210
    %p221 = scmp.eq.s32.totalorder %s19, 0
    %p222 = por %p220, %p221
    %p223 = scmp.ne.s32.totalorder %s209, %s210
    %p224 = scmp.eq.s32.totalorder %s20, 1
    %p225 = por %p223, %p224
    %p227 = scmp.ne.s32.totalorder %s210, %s226
    %p228 = scmp.eq.s32.totalorder %s20, 0
    %p229 = por %p227, %p228
    %p230 = scmp.le.s32.totalorder 1, %s14
    %p231 = scmp.lt.s32.totalorder %s14, 3
    %p232 = pnand %p230, %p231
    %p233 = pneg %p232
    // Predicated region
    $region9: #{unet_block_forward.2} parent=5 // pred_check
      _
    $region10: #{unet_block_forward.2} parent=5 // pred_check_branch
      %235 = sbr.rel (%p232) target = $region12
    $region11: #{unet_block_forward.2} parent=5 // pred_region
      %s236 = ssub.s32 %s14, 1
      // Predicated region
      $region13: #{unet_block_forward.2} parent=11 // pred_check
        %p237 = pneg %p103
      $region14: #{unet_block_forward.2} parent=11 // pred_check_branch
        %239 = sbr.rel (%p237) target = $region16
      $region15: #{unet_block_forward.2} parent=11 // pred_region
        _
      $region16: #{unet_block_forward.2} parent=11 // pred_fallthru
        _
      // Predicated region
      $region17: #{unet_block_forward.2} parent=11 // pred_check
        %p240 = pneg %p124
      $region18: #{unet_block_forward.2} parent=11 // pred_check_branch
        %242 = sbr.rel (%p240) target = $region20
      $region19: #{unet_block_forward.2} parent=11 // pred_region
        _
      $region20: #{unet_block_forward.2} parent=11 // pred_fallthru
        _
      // Predicated region
      $region21: #{unet_block_forward.2} parent=11 // pred_check
        %p243 = pneg %p145
      $region22: #{unet_block_forward.2} parent=11 // pred_check_branch
        %245 = sbr.rel (%p243) target = $region24
      $region23: #{unet_block_forward.2} parent=11 // pred_region
        _
      $region24: #{unet_block_forward.2} parent=11 // pred_fallthru
        _
      // Predicated region
      $region25: #{unet_block_forward.2} parent=11 // pred_check
        %p246 = pneg %p166
      $region26: #{unet_block_forward.2} parent=11 // pred_check_branch
        %248 = sbr.rel (%p246) target = $region28
      $region27: #{unet_block_forward.2} parent=11 // pred_region
        _
      $region28: #{unet_block_forward.2} parent=11 // pred_fallthru
        _
    $region12: #{unet_block_forward.2} parent=5 // pred_fallthru
      _
    %p249 = scmp.lt.s32.totalorder %s14, 2
    // Predicated region
    $region29: #{unet_block_forward.2} parent=5 // pred_check
      %p250 = pneg %p249
    $region30: #{unet_block_forward.2} parent=5 // pred_check_branch
      %252 = sbr.rel (%p250) target = $region32
    $region31: #{unet_block_forward.2} parent=5 // pred_region
      // Predicated region
      $region33: #{unet_block_forward.2} parent=31 // pred_check
        %p253 = pneg %p48
      $region34: #{unet_block_forward.2} parent=31 // pred_check_branch
        %255 = sbr.rel (%p253) target = $region36
      $region35: #{unet_block_forward.2} parent=31 // pred_region
        %s256 = smul.u32 2, %s22
        %p257 = scmp.lt.s32.totalorder %s21, 1
        %s258 = scalar_select %p257, %s21, 1
        %p259 = scmp.lt.s32.totalorder %s256, 1
        %s260 = scalar_select %p259, %s256, 1
        %s261 = smul.addr %s258, 2
        %s262 = sadd.s32 %s260, %s261
        %s263 = smul.addr %s262, 4
        %s264 = scalar_lea.vmem %s0, %s263
        %s265 = smul.u32 2, %s22
      $region36: #{unet_block_forward.2} parent=31 // pred_fallthru
        _
      // Predicated region
      $region37: #{unet_block_forward.2} parent=31 // pred_check
        %p266 = pneg %p76
      $region38: #{unet_block_forward.2} parent=31 // pred_check_branch
        %268 = sbr.rel (%p266) target = $region40
      $region39: #{unet_block_forward.2} parent=31 // pred_region
        %s269 = smul.u32 8, %s22
        %p270 = scmp.lt.s32.totalorder %s21, 1
        %s271 = scalar_select %p270, %s21, 1
        %p272 = scmp.lt.s32.totalorder %s269, 7
        %s273 = scalar_select %p272, %s269, 7
        %s274 = smul.addr %s271, 8
        %s275 = sadd.s32 %s273, %s274
        %s276 = smul.addr %s275, 4
        %s277 = scalar_lea.vmem %s1, %s276
        %s278 = smul.u32 8, %s22
      $region40: #{unet_block_forward.2} parent=31 // pred_fallthru
        _
    $region32: #{unet_block_forward.2} parent=5 // pred_fallthru
      _
    %p279 = scmp.le.s32.totalorder 1, %s14
    %p280 = scmp.lt.s32.totalorder %s14, 3
    %p281 = pnand %p279, %p280
    %p282 = pneg %p281
    // Predicated region
    $region41: #{unet_block_forward.2} parent=5 // pred_check
      _
    $region42: #{unet_block_forward.2} parent=5 // pred_check_branch
      %284 = sbr.rel (%p281) target = $region44
    $region43: #{unet_block_forward.2} parent=5 // pred_region
      %s285 = ssub.s32 %s14, 1
      %s286 = smul.u32 2, %s24
      %p287 = scmp.lt.s32.totalorder %s23, 1
      %s288 = scalar_select %p287, %s23, 1
      %p289 = scmp.lt.s32.totalorder %s286, 1
      %s290 = scalar_select %p289, %s286, 1
      %s291 = smul.addr %s288, 2
      %s292 = sadd.s32 %s290, %s291
      %s293 = smul.addr %s292, 4
      %s294 = scalar_lea.vmem %s0, %s293
      %p295 = pneg %p54
      %p296 = pneg %p51
      %s297 = smul.u32 8, %s24
      %p298 = scmp.lt.s32.totalorder %s23, 1
      %s299 = scalar_select %p298, %s23, 1
      %p300 = scmp.lt.s32.totalorder %s297, 7
      %s301 = scalar_select %p300, %s297, 7
      %s302 = smul.addr %s299, 8
      %s303 = sadd.s32 %s301, %s302
      %s304 = smul.addr %s303, 4
      %s305 = scalar_lea.vmem %s1, %s304
      %p306 = pneg %p82
      %p307 = pneg %p79
      %p308 = pneg %p103
      %p309 = pneg %p100
      %p310 = pneg %p124
      %p311 = pneg %p121
      %p312 = pneg %p145
      %p313 = pneg %p142
      %p314 = pneg %p166
      %p315 = pneg %p163
      %p316 = pneg %p194
      %p317 = pneg %p191
      %p318 = scmp.lt.s32.totalorder %s23, 1
      %s319 = scalar_select %p318, %s23, 1
      %p320 = scmp.lt.s32.totalorder %s24, 0
      %s321 = scalar_select %p320, %s24, 0
      %s322 = smul.addr %s321, 2
      %s323 = smul.addr %s319, 2
      %s324 = sadd.s32 %s322, %s323
      %s325 = smul.addr %s324, 8
      %s326 = scalar_lea.vmem %s6, %s325
      %p327 = pneg %p222
      %p328 = pneg %p219
      %p329 = scmp.lt.s32.totalorder %s23, 1
      %s330 = scalar_select %p329, %s23, 1
      %p331 = scmp.lt.s32.totalorder %s24, 0
      %s332 = scalar_select %p331, %s24, 0
      %s333 = sadd.s32 %s332, %s330
      %s334 = smul.addr %s333, 4
      %s335 = scalar_lea.vmem %s7, %s334
      %s336 = smul.u32 2, %s24
      %p337 = scmp.lt.s32.totalorder %s23, 1
      %s338 = scalar_select %p337, %s23, 1
      %p339 = scmp.lt.s32.totalorder %s336, 1
      %s340 = scalar_select %p339, %s336, 1
      %s341 = smul.addr %s338, 2
      %s342 = sadd.s32 %s340, %s341
      %s343 = smul.addr %s342, 4
      %s344 = scalar_lea.vmem %s0, %s343
      %s345 = smul.u32 2, %s24
      %s346 = smul.u32 8, %s24
      %p347 = scmp.lt.s32.totalorder %s23, 1
      %s348 = scalar_select %p347, %s23, 1
      %p349 = scmp.lt.s32.totalorder %s346, 7
      %s350 = scalar_select %p349, %s346, 7
      %s351 = smul.addr %s348, 8
      %s352 = sadd.s32 %s350, %s351
      %s353 = smul.addr %s352, 4
      %s354 = scalar_lea.vmem %s1, %s353
      %s355 = smul.u32 8, %s24
      %p356 = scmp.lt.s32.totalorder %s23, 1
      %s357 = scalar_select %p356, %s23, 1
      %p358 = scmp.lt.s32.totalorder %s24, 0
      %s359 = scalar_select %p358, %s24, 0
      %s360 = smul.addr %s359, 2
      %s361 = smul.addr %s357, 2
      %s362 = sadd.s32 %s360, %s361
      %s363 = smul.addr %s362, 8
      %s364 = scalar_lea.vmem %s6, %s363
      %p365 = scmp.lt.s32.totalorder %s23, 1
      %s366 = scalar_select %p365, %s23, 1
      %p367 = scmp.lt.s32.totalorder %s24, 0
      %s368 = scalar_select %p367, %s24, 0
      %s369 = sadd.s32 %s368, %s366
      %s370 = smul.addr %s369, 4
      %s371 = scalar_lea.vmem %s7, %s370
      %v373 = vld [vmem:[%s2] sm:$0xf]
      %v374 = vld [vmem:[%s2 + $0x4] sm:$0xf]
      %v375 = vld [vmem:[%s344] sm:$0xff]
      %377 = vst [vmem:[#allocation1] ss:$2 sm:$0xff] %v375
      %v378 = vld.sshfl [vmem:[#allocation1] sm:$0xff pattern:$0x75316420]
      %v379 = vld.sshfl [vmem:[#allocation1 + $0x8] sm:$0xff pattern:$0x75316420]
      %v382 = vpack.c.bf16 %v378, %v378
      %v383 = vpack.c.bf16 %v379, %v379
      %v384 = vld [vmem:[%s3] sm:$0xff]
      %v385 = vld [vmem:[%s3 + $0x8] sm:$0xff]
      %387 = vset.pattern.permute.xlu0 0
      %388 = vperm.xlu0 %387, %v384
      %v389 = vpop.permute.xlu0 %388
      %392 = vset.pattern.permute.xlu0 0
      %393 = vperm.xlu0 %392, %v385
      %v394 = vpop.permute.xlu0 %393
      %v398 = vunpack.c.l.b16 %v373
      %v399 = vunpack.c.l.b16 %v374
      %v400 = vpack.c.b16 %v399, %v398
      %vm401 = vcmask 31744
      %v403 = vsel %vm401, %v400, 0
      %vm405 = vcmask 1041408
      %v407 = vsel %vm405, %v382, 0
      %v410 = vsel %vm405, %v383, 0
      %412 = vmatpush.bf16.msra.mxu0 0
      %413 = vmatpush.bf16.msra.mxu0 0
      %414 = vmatpush.bf16.msra.mxu0 0
      %415 = vmatpush.bf16.msra.mxu0 0
      %416 = vmatpush.bf16.msra.mxu0 0
      %417 = vmatpush.bf16.msra.mxu0 0
      %418 = vmatpush.bf16.msra.mxu0 0
      %419 = vmatpush.bf16.msra.mxu0 %v407
      %420 = vmatmul.bf16.gmra.mxu0 %v403
      %v421 = vpop.f32.mrf.mxu0
      %v422 = vadd.f32 %v389, %v421
      %v423 = vpop.f32.mrf.mxu0
      %v424 = vadd.f32 %v394, %v423
      %425 = vdwg.mxu0
      %426 = vmatpush.bf16.msra.mxu0 0
      %427 = vmatpush.bf16.msra.mxu0 0
      %428 = vmatpush.bf16.msra.mxu0 0
      %429 = vmatpush.bf16.msra.mxu0 0
      %430 = vmatpush.bf16.msra.mxu0 0
      %431 = vmatpush.bf16.msra.mxu0 0
      %432 = vmatpush.bf16.msra.mxu0 0
      %433 = vmatpush.bf16.msra.mxu0 %v410
      %434 = vmatmul.bf16.gmra.mxu0 %v403
      %v435 = vpop.f32.mrf.mxu0
      %v436 = vadd.f32 %v389, %v435
      %v437 = vpop.f32.mrf.mxu0
      %v438 = vadd.f32 %v394, %v437
      %439 = vdwg.mxu0
      %v440 = vmax.f32 %v422, 0.0
      %v441 = vmax.f32 %v436, 0.0
      %v442 = vmax.f32 %v424, 0.0
      %v443 = vmax.f32 %v438, 0.0
      %v444 = vld [vmem:[%s4] sm:$0x3]
      %v445 = vld [vmem:[%s354] sm:$0xff]
      %v446 = vld [vmem:[%s354 + $0x8] sm:$0xff]
      %v447 = vld [vmem:[%s354 + $0x10] sm:$0xff]
      %v448 = vld [vmem:[%s354 + $0x18] sm:$0xff]
      %453 = vst [vmem:[#allocation1] ss:$2 sm:$0xff] %v445
      %s454 = scalar_lea.vmem [#allocation1], 16
      %455 = vst [vmem:[%s454] ss:$2 sm:$0xff] %v446
      %s456 = scalar_lea.vmem [#allocation1], 32
      %457 = vst [vmem:[%s456] ss:$2 sm:$0xff] %v447
      %s458 = scalar_lea.vmem [#allocation1], 48
      %459 = vst [vmem:[%s458] ss:$2 sm:$0xff] %v448
      %v460 = vld.sshfl [vmem:[#allocation1] sm:$0xff pattern:$0x75316420]
      %v461 = vld.sshfl [vmem:[#allocation1 + $0x8] sm:$0xff pattern:$0x75316420]
      %v462 = vld.sshfl [vmem:[#allocation1 + $0x10] sm:$0xff pattern:$0x75316420]
      %v463 = vld.sshfl [vmem:[#allocation1 + $0x18] sm:$0xff pattern:$0x75316420]
      %v464 = vld.sshfl [vmem:[#allocation1 + $0x20] sm:$0xff pattern:$0x75316420]
      %v465 = vld.sshfl [vmem:[#allocation1 + $0x28] sm:$0xff pattern:$0x75316420]
      %v466 = vld.sshfl [vmem:[#allocation1 + $0x30] sm:$0xff pattern:$0x75316420]
      %v467 = vld.sshfl [vmem:[#allocation1 + $0x38] sm:$0xff pattern:$0x75316420]
      %v476 = vpack.c.bf16 %v460, %v460
      %v477 = vpack.c.bf16 %v461, %v461
      %v478 = vpack.c.bf16 %v462, %v462
      %v479 = vpack.c.bf16 %v463, %v463
      %v480 = vpack.c.bf16 %v464, %v464
      %v481 = vpack.c.bf16 %v465, %v465
      %v482 = vpack.c.bf16 %v466, %v466
      %v483 = vpack.c.bf16 %v467, %v467
      %v484 = vld [vmem:[%s5] sm:$0xf]
      %486 = vset.pattern.permute.xlu0 0
      %487 = vperm.xlu0 %486, %v484
      %v488 = vpop.permute.xlu0 %487
      %v491 = vsel %vm401, %v444, 0
      %v494 = vsel %vm405, %v476, 0
      %v497 = vsel %vm405, %v477, 0
      %v500 = vsel %vm405, %v478, 0
      %v503 = vsel %vm405, %v479, 0
      %v506 = vsel %vm405, %v480, 0
      %v509 = vsel %vm405, %v481, 0
      %v512 = vsel %vm405, %v482, 0
      %v515 = vsel %vm405, %v483, 0
      %517 = vmatpush.bf16.msra.mxu0 0
      %518 = vmatpush.bf16.msra.mxu0 0
      %519 = vmatpush.bf16.msra.mxu0 0
      %520 = vmatpush.bf16.msra.mxu0 0
      %521 = vmatpush.bf16.msra.mxu0 0
      %522 = vmatpush.bf16.msra.mxu0 0
      %523 = vmatpush.bf16.msra.mxu0 0
      %524 = vmatpush.bf16.msra.mxu0 %v494
      %525 = vmatmul.bf16.gmra.mxu0 %v491
      %v526 = vpop.f32.mrf.mxu0
      %v527 = vadd.f32 %v488, %v526
      %v528 = vpop.f32.mrf.mxu0
      %529 = vdwg.mxu0
      %530 = vmatpush.bf16.msra.mxu0 0
      %531 = vmatpush.bf16.msra.mxu0 0
      %532 = vmatpush.bf16.msra.mxu0 0
      %533 = vmatpush.bf16.msra.mxu0 0
      %534 = vmatpush.bf16.msra.mxu0 0
      %535 = vmatpush.bf16.msra.mxu0 0
      %536 = vmatpush.bf16.msra.mxu0 0
      %537 = vmatpush.bf16.msra.mxu0 %v497
      %538 = vmatmul.bf16.gmra.mxu0 %v491
      %v539 = vpop.f32.mrf.mxu0
      %v540 = vadd.f32 %v488, %v539
      %v541 = vpop.f32.mrf.mxu0
      %542 = vdwg.mxu0
      %543 = vmatpush.bf16.msra.mxu0 0
      %544 = vmatpush.bf16.msra.mxu0 0
      %545 = vmatpush.bf16.msra.mxu0 0
      %546 = vmatpush.bf16.msra.mxu0 0
      %547 = vmatpush.bf16.msra.mxu0 0
      %548 = vmatpush.bf16.msra.mxu0 0
      %549 = vmatpush.bf16.msra.mxu0 0
      %550 = vmatpush.bf16.msra.mxu0 %v500
      %551 = vmatmul.bf16.gmra.mxu0 %v491
      %v552 = vpop.f32.mrf.mxu0
      %v553 = vadd.f32 %v488, %v552
      %v554 = vpop.f32.mrf.mxu0
      %555 = vdwg.mxu0
      %556 = vmatpush.bf16.msra.mxu0 0
      %557 = vmatpush.bf16.msra.mxu0 0
      %558 = vmatpush.bf16.msra.mxu0 0
      %559 = vmatpush.bf16.msra.mxu0 0
      %560 = vmatpush.bf16.msra.mxu0 0
      %561 = vmatpush.bf16.msra.mxu0 0
      %562 = vmatpush.bf16.msra.mxu0 0
      %563 = vmatpush.bf16.msra.mxu0 %v503
      %564 = vmatmul.bf16.gmra.mxu0 %v491
      %v565 = vpop.f32.mrf.mxu0
      %v566 = vadd.f32 %v488, %v565
      %v567 = vpop.f32.mrf.mxu0
      %568 = vdwg.mxu0
      %569 = vmatpush.bf16.msra.mxu0 0
      %570 = vmatpush.bf16.msra.mxu0 0
      %571 = vmatpush.bf16.msra.mxu0 0
      %572 = vmatpush.bf16.msra.mxu0 0
      %573 = vmatpush.bf16.msra.mxu0 0
      %574 = vmatpush.bf16.msra.mxu0 0
      %575 = vmatpush.bf16.msra.mxu0 0
      %576 = vmatpush.bf16.msra.mxu0 %v506
      %577 = vmatmul.bf16.gmra.mxu0 %v491
      %v578 = vpop.f32.mrf.mxu0
      %v579 = vadd.f32 %v488, %v578
      %v580 = vpop.f32.mrf.mxu0
      %581 = vdwg.mxu0
      %582 = vmatpush.bf16.msra.mxu0 0
      %583 = vmatpush.bf16.msra.mxu0 0
      %584 = vmatpush.bf16.msra.mxu0 0
      %585 = vmatpush.bf16.msra.mxu0 0
      %586 = vmatpush.bf16.msra.mxu0 0
      %587 = vmatpush.bf16.msra.mxu0 0
      %588 = vmatpush.bf16.msra.mxu0 0
      %589 = vmatpush.bf16.msra.mxu0 %v509
      %590 = vmatmul.bf16.gmra.mxu0 %v491
      %v591 = vpop.f32.mrf.mxu0
      %v592 = vadd.f32 %v488, %v591
      %v593 = vpop.f32.mrf.mxu0
      %594 = vdwg.mxu0
      %595 = vmatpush.bf16.msra.mxu0 0
      %596 = vmatpush.bf16.msra.mxu0 0
      %597 = vmatpush.bf16.msra.mxu0 0
      %598 = vmatpush.bf16.msra.mxu0 0
      %599 = vmatpush.bf16.msra.mxu0 0
      %600 = vmatpush.bf16.msra.mxu0 0
      %601 = vmatpush.bf16.msra.mxu0 0
      %602 = vmatpush.bf16.msra.mxu0 %v512
      %603 = vmatmul.bf16.gmra.mxu0 %v491
      %v604 = vpop.f32.mrf.mxu0
      %v605 = vadd.f32 %v488, %v604
      %v606 = vpop.f32.mrf.mxu0
      %607 = vdwg.mxu0
      %608 = vmatpush.bf16.msra.mxu0 0
      %609 = vmatpush.bf16.msra.mxu0 0
      %610 = vmatpush.bf16.msra.mxu0 0
      %611 = vmatpush.bf16.msra.mxu0 0
      %612 = vmatpush.bf16.msra.mxu0 0
      %613 = vmatpush.bf16.msra.mxu0 0
      %614 = vmatpush.bf16.msra.mxu0 0
      %615 = vmatpush.bf16.msra.mxu0 %v515
      %616 = vmatmul.bf16.gmra.mxu0 %v491
      %v617 = vpop.f32.mrf.mxu0
      %v618 = vadd.f32 %v488, %v617
      %v619 = vpop.f32.mrf.mxu0
      %620 = vdwg.mxu0
      %v621 = vmax.f32 %v527, 0.0
      %v622 = vmax.f32 %v540, 0.0
      %v623 = vmax.f32 %v553, 0.0
      %v624 = vmax.f32 %v566, 0.0
      %v625 = vmax.f32 %v579, 0.0
      %v626 = vmax.f32 %v592, 0.0
      %v627 = vmax.f32 %v605, 0.0
      %v628 = vmax.f32 %v618, 0.0
      %v629 = vadd.f32 %v440, %v441
      %630 = vadd.xlane.f32.xlu0 %v629
      %v631 = vpop.xlane.xlu0 %630
      %v632 = vadd.f32 %v442, %v443
      %633 = vadd.xlane.f32.xlu0 %v632
      %v634 = vpop.xlane.xlu0 %633
      %v635 = vmul.f32 %v440, %v440
      %v636 = vmul.f32 %v441, %v441
      %v637 = vmul.f32 %v442, %v442
      %v638 = vmul.f32 %v443, %v443
      %v639 = vadd.f32 %v635, %v636
      %640 = vadd.xlane.f32.xlu0 %v639
      %v641 = vpop.xlane.xlu0 %640
      %v642 = vadd.f32 %v637, %v638
      %643 = vadd.xlane.f32.xlu0 %v642
      %v644 = vpop.xlane.xlu0 %643
      %vm645 = vcmask 7168
      %v646 = vsel %vm645, %v631, %v641
      %v647 = vsel %vm645, %v634, %v644
      %vm648 = vcmask 1043456
      %v649 = vsel %vm648, %v621, 0.0
      %v650 = vsel %vm648, %v622, 0.0
      %v651 = vadd.f32 %v649, %v650
      %v652 = vsel %vm648, %v623, 0.0
      %v653 = vadd.f32 %v651, %v652
      %v654 = vsel %vm648, %v624, 0.0
      %v655 = vadd.f32 %v653, %v654
      %v656 = vsel %vm648, %v625, 0.0
      %v657 = vadd.f32 %v655, %v656
      %v658 = vsel %vm648, %v626, 0.0
      %v659 = vadd.f32 %v657, %v658
      %v660 = vsel %vm648, %v627, 0.0
      %v661 = vadd.f32 %v659, %v660
      %v662 = vsel %vm648, %v628, 0.0
      %v663 = vadd.f32 %v661, %v662
      %664 = vadd.xlane.f32.xlu0 %v663
      %v665 = vpop.xlane.xlu0 %664
      %v666 = vmul.f32 %v621, %v621
      %v667 = vmul.f32 %v622, %v622
      %v668 = vmul.f32 %v623, %v623
      %v669 = vmul.f32 %v624, %v624
      %v670 = vmul.f32 %v625, %v625
      %v671 = vmul.f32 %v626, %v626
      %v672 = vmul.f32 %v627, %v627
      %v673 = vmul.f32 %v628, %v628
      %v674 = vsel %vm648, %v666, 0.0
      %v675 = vsel %vm648, %v667, 0.0
      %v676 = vadd.f32 %v674, %v675
      %v677 = vsel %vm648, %v668, 0.0
      %v678 = vadd.f32 %v676, %v677
      %v679 = vsel %vm648, %v669, 0.0
      %v680 = vadd.f32 %v678, %v679
      %v681 = vsel %vm648, %v670, 0.0
      %v682 = vadd.f32 %v680, %v681
      %v683 = vsel %vm648, %v671, 0.0
      %v684 = vadd.f32 %v682, %v683
      %v685 = vsel %vm648, %v672, 0.0
      %v686 = vadd.f32 %v684, %v685
      %v687 = vsel %vm648, %v673, 0.0
      %v688 = vadd.f32 %v686, %v687
      %689 = vadd.xlane.f32.xlu0 %v688
      %v690 = vpop.xlane.xlu0 %689
      %v691 = vsel %vm645, %v665, %v690
      %vm692 = vcmask 15360
      %693 = vst.msk [vmem:[%s364] sm:$0xff] %vm692, %v646
      %694 = vst.msk [vmem:[%s364 + $0x8] sm:$0xff] %vm692, %v647
      %vm695 = vcmask 11264
      %696 = vst.msk [vmem:[%s371] sm:$0xf] %vm695, %v691
      %p697 = scmp.lt.s32.totalorder %s23, 1
      %s698 = scalar_select %p697, %s23, 1
      %p699 = scmp.lt.s32.totalorder %s24, 0
      %s700 = scalar_select %p699, %s24, 0
      %s701 = smul.addr %s700, 2
      %s702 = smul.addr %s698, 2
      %s703 = sadd.s32 %s701, %s702
      %s704 = smul.addr %s703, 8
      %s705 = scalar_lea.vmem %s6, %s704
      %p706 = scmp.lt.s32.totalorder %s23, 1
      %s707 = scalar_select %p706, %s23, 1
      %p708 = scmp.lt.s32.totalorder %s24, 0
      %s709 = scalar_select %p708, %s24, 0
      %s710 = sadd.s32 %s709, %s707
      %s711 = smul.addr %s710, 4
      %s712 = scalar_lea.vmem %s7, %s711
      // Predicated region
      $region45: #{unet_block_forward.2} parent=43 // pred_check
        %p713 = pneg %p191
      $region46: #{unet_block_forward.2} parent=43 // pred_check_branch
        %715 = sbr.rel (%p713) target = $region48
      $region47: #{unet_block_forward.2} parent=43 // pred_region
        _
      $region48: #{unet_block_forward.2} parent=43 // pred_fallthru
        _
      // Predicated region
      $region49: #{unet_block_forward.2} parent=43 // pred_check
        %p716 = pneg %p219
      $region50: #{unet_block_forward.2} parent=43 // pred_check_branch
        %718 = sbr.rel (%p716) target = $region52
      $region51: #{unet_block_forward.2} parent=43 // pred_region
        _
      $region52: #{unet_block_forward.2} parent=43 // pred_fallthru
        _
    $region44: #{unet_block_forward.2} parent=5 // pred_fallthru
      _
    %p719 = scmp.le.s32.totalorder 2, %s14
    // Predicated region
    $region53: #{unet_block_forward.2} parent=5 // pred_check
      %p720 = pneg %p719
    $region54: #{unet_block_forward.2} parent=5 // pred_check_branch
      %722 = sbr.rel (%p720) target = $region56
    $region55: #{unet_block_forward.2} parent=5 // pred_region
      %s723 = ssub.s32 %s14, 2
      // Predicated region
      $region57: #{unet_block_forward.2} parent=55 // pred_check
        %p724 = pneg %p197
      $region58: #{unet_block_forward.2} parent=55 // pred_check_branch
        %726 = sbr.rel (%p724) target = $region60
      $region59: #{unet_block_forward.2} parent=55 // pred_region
        %p727 = scmp.lt.s32.totalorder %s25, 1
        %s728 = scalar_select %p727, %s25, 1
        %p729 = scmp.lt.s32.totalorder %s26, 0
        %s730 = scalar_select %p729, %s26, 0
        %s731 = smul.addr %s730, 2
        %s732 = smul.addr %s728, 2
        %s733 = sadd.s32 %s731, %s732
        %s734 = smul.addr %s733, 8
        %s735 = scalar_lea.vmem %s6, %s734
      $region60: #{unet_block_forward.2} parent=55 // pred_fallthru
        _
      // Predicated region
      $region61: #{unet_block_forward.2} parent=55 // pred_check
        %p736 = pneg %p225
      $region62: #{unet_block_forward.2} parent=55 // pred_check_branch
        %738 = sbr.rel (%p736) target = $region64
      $region63: #{unet_block_forward.2} parent=55 // pred_region
        %p739 = scmp.lt.s32.totalorder %s25, 1
        %s740 = scalar_select %p739, %s25, 1
        %p741 = scmp.lt.s32.totalorder %s26, 0
        %s742 = scalar_select %p741, %s26, 0
        %s743 = sadd.s32 %s742, %s740
        %s744 = smul.addr %s743, 4
        %s745 = scalar_lea.vmem %s7, %s744
      $region64: #{unet_block_forward.2} parent=55 // pred_fallthru
        _
    $region56: #{unet_block_forward.2} parent=5 // pred_fallthru
      _
  $region6: #{unet_block_forward.2} parent=0 // loop_footer
    %s18 = sadd.s32 1, %s14
  $region7: #{unet_block_forward.2} parent=0 // loop_footer_branch
    %13 = sbr.rel target = $region3
  $region8: #{unet_block_forward.2} parent=0 // loop_exit
    _

// kernel: unet_block_forward.3
$region0: #{unet_block_forward.3}
  #allocation0 [shape = 'u32[]', space=smem, size = 0x4, offset = 0x4, fixed_abs, tag = 'smem constant byte address 0x4 - core index']
  #allocation1 [shape = 'u32[72,128]{1,0:T(1,128)}', space=vmem, size = 0x9000, scoped, tag = 'internal scratch']
  %s0 = inlined_call_operand.vmem [shape: f32[2,4,256], index: 0, kind: input, shape index: {}]
  %s1 = inlined_call_operand.vmem [shape: f32[2,4,1024], index: 1, kind: input, shape index: {}]
  %s2 = inlined_call_operand.vmem [shape: bf16[16,4], index: 2, kind: input, shape index: {}]
  %s3 = inlined_call_operand.vmem [shape: f32[16,1], index: 3, kind: input, shape index: {}]
  %s4 = inlined_call_operand.vmem [shape: bf16[4,4], index: 4, kind: input, shape index: {}]
  %s5 = inlined_call_operand.vmem [shape: f32[4,1], index: 5, kind: input, shape index: {}]
  %s6 = inlined_call_operand.vmem [shape: f32[16,1], index: 6, kind: input, shape index: {}]
  %s7 = inlined_call_operand.vmem [shape: f32[16,1], index: 7, kind: input, shape index: {}]
  %s8 = inlined_call_operand.vmem [shape: f32[4,1], index: 8, kind: input, shape index: {}]
  %s9 = inlined_call_operand.vmem [shape: f32[4,1], index: 9, kind: input, shape index: {}]
  %s10 = inlined_call_operand.vmem [shape: bf16[2,16,256], index: 10, kind: output, shape index: {0}]
  %s11 = inlined_call_operand.vmem [shape: bf16[2,4,1024], index: 11, kind: output, shape index: {1}]
  %12 = xla_tuple %s10, %s11
  %s13 = sld [smem:[#allocation0]]
  $region81: #{unet_block_forward.3} parent=0
    _
  %s15 = ssub.s32 1, %s13
  %s16 = scalar_select 0, %s15, %s13
  loop: start=0, step=1, limit=4
  $region2: #{unet_block_forward.3} parent=0 // loop_pre_header
    _
  $region3: #{unet_block_forward.3} parent=0 // loop_header
    %s18 = sphi 0, %s22
    %p19 = scmp.ge.s32.totalorder %s18, 4
    %s25 = sphi 0, %s37
    %s26 = sphi 0, %s33
    %s27 = sphi 0, %s25
    %s28 = sphi 0, %s26
    %s29 = sphi 0, %s27
    %s30 = sphi 0, %s28
    %s42 = sphi 0, %s44
    %s45 = sphi 0, %s42
    %s46 = sphi 0, %s45
    %s62 = sphi 0, %s46
    %s70 = sphi 0, %s72
    %s73 = sphi 0, %s70
    %s74 = sphi 0, %s73
    %s90 = sphi 0, %s74
    %s94 = sphi 0, %s94
    %s96 = sphi 0, %s94
    %s97 = sphi 0, %s96
    %s111 = sphi 0, %s97
    %s115 = sphi 0, %s115
    %s117 = sphi 0, %s115
    %s118 = sphi 0, %s117
    %s132 = sphi 0, %s118
    %s136 = sphi 0, %s136
    %s138 = sphi 0, %s136
    %s139 = sphi 0, %s138
    %s153 = sphi 0, %s139
    %s157 = sphi 0, %s157
    %s159 = sphi 0, %s157
    %s160 = sphi 0, %s159
    %s174 = sphi 0, %s160
    %s178 = sphi 0, %s178
    %s180 = sphi 0, %s178
    %s181 = sphi 0, %s180
    %s195 = sphi 0, %s181
    %s199 = sphi 0, %s199
    %s201 = sphi 0, %s199
    %s202 = sphi 0, %s201
    %s216 = sphi 0, %s202
    %s220 = sphi 0, %s220
    %s222 = sphi 0, %s220
    %s223 = sphi 0, %s222
    %s237 = sphi 0, %s223
    %s241 = sphi 0, %s241
    %s243 = sphi 0, %s241
    %s244 = sphi 0, %s243
    %s258 = sphi 0, %s244
    %s266 = sphi 0, %s268
    %s269 = sphi 0, %s266
    %s270 = sphi 0, %s269
    %s286 = sphi 0, %s270
    %s294 = sphi 0, %s296
    %s297 = sphi 0, %s294
    %s298 = sphi 0, %s297
    %s314 = sphi 0, %s298
  $region4: #{unet_block_forward.3} parent=0 // loop_header_branch
    %21 = sbr.rel (%p19) target = $region8
  $region5: #{unet_block_forward.3} parent=0 // loop_body
    %s23 = ssub.s32 %s18, 1
    %s24 = ssub.s32 %s18, 2
    %s31 = sadd.s32 1, %s26
    %p32 = scmp.ge.s32.totalorder %s31, 1
    %s33 = scalar_select %p32, 0, %s31
    %s34 = sadd.s32 1, %s25
    %s35 = scalar_select %p32, %s34, %s25
    %p36 = scmp.ge.s32.totalorder %s35, 2
    %s37 = scalar_select %p36, 0, %s35
    %s38 = ssub.s32 %s25, %s37
    %s39 = ssub.s32 %s26, %s33
    %s40 = sor.u32 %s38, %s39
    %p41 = scmp.eq.s32.totalorder %s40, 0
    %s43 = sadd.s32 %s42, 1
    %s44 = scalar_select %p41, %s42, %s43
    %p47 = pneg %p41
    %p48 = scmp.eq.s32.totalorder %s18, 1
    %p49 = por %p47, %p48
    %p50 = scmp.ne.s32.totalorder %s42, %s45
    %p51 = scmp.eq.s32.totalorder %s18, 0
    %p52 = por %p50, %p51
    %p53 = scmp.ne.s32.totalorder %s42, %s45
    %p54 = scmp.eq.s32.totalorder %s23, 1
    %p55 = por %p53, %p54
    %p56 = scmp.ne.s32.totalorder %s45, %s46
    %p57 = scmp.eq.s32.totalorder %s23, 0
    %p58 = por %p56, %p57
    %p59 = scmp.ne.s32.totalorder %s45, %s46
    %p60 = scmp.eq.s32.totalorder %s24, 1
    %p61 = por %p59, %p60
    %p63 = scmp.ne.s32.totalorder %s46, %s62
    %p64 = scmp.eq.s32.totalorder %s24, 0
    %p65 = por %p63, %p64
    %s66 = ssub.s32 %s25, %s37
    %s67 = ssub.s32 %s26, %s33
    %s68 = sor.u32 %s66, %s67
    %p69 = scmp.eq.s32.totalorder %s68, 0
    %s71 = sadd.s32 %s70, 1
    %s72 = scalar_select %p69, %s70, %s71
    %p75 = pneg %p69
    %p76 = scmp.eq.s32.totalorder %s18, 1
    %p77 = por %p75, %p76
    %p78 = scmp.ne.s32.totalorder %s70, %s73
    %p79 = scmp.eq.s32.totalorder %s18, 0
    %p80 = por %p78, %p79
    %p81 = scmp.ne.s32.totalorder %s70, %s73
    %p82 = scmp.eq.s32.totalorder %s23, 1
    %p83 = por %p81, %p82
    %p84 = scmp.ne.s32.totalorder %s73, %s74
    %p85 = scmp.eq.s32.totalorder %s23, 0
    %p86 = por %p84, %p85
    %p87 = scmp.ne.s32.totalorder %s73, %s74
    %p88 = scmp.eq.s32.totalorder %s24, 1
    %p89 = por %p87, %p88
    %p91 = scmp.ne.s32.totalorder %s74, %s90
    %p92 = scmp.eq.s32.totalorder %s24, 0
    %p93 = por %p91, %p92
    %s95 = sadd.s32 %s94, 1
    %p98 = scmp.eq.s32.totalorder %s18, 1
    %p99 = scmp.ne.s32.totalorder %s94, %s96
    %p100 = scmp.eq.s32.totalorder %s18, 0
    %p101 = por %p99, %p100
    %p102 = scmp.ne.s32.totalorder %s94, %s96
    %p103 = scmp.eq.s32.totalorder %s23, 1
    %p104 = por %p102, %p103
    %p105 = scmp.ne.s32.totalorder %s96, %s97
    %p106 = scmp.eq.s32.totalorder %s23, 0
    %p107 = por %p105, %p106
    %p108 = scmp.ne.s32.totalorder %s96, %s97
    %p109 = scmp.eq.s32.totalorder %s24, 1
    %p110 = por %p108, %p109
    %p112 = scmp.ne.s32.totalorder %s97, %s111
    %p113 = scmp.eq.s32.totalorder %s24, 0
    %p114 = por %p112, %p113
    %s116 = sadd.s32 %s115, 1
    %p119 = scmp.eq.s32.totalorder %s18, 1
    %p120 = scmp.ne.s32.totalorder %s115, %s117
    %p121 = scmp.eq.s32.totalorder %s18, 0
    %p122 = por %p120, %p121
    %p123 = scmp.ne.s32.totalorder %s115, %s117
    %p124 = scmp.eq.s32.totalorder %s23, 1
    %p125 = por %p123, %p124
    %p126 = scmp.ne.s32.totalorder %s117, %s118
    %p127 = scmp.eq.s32.totalorder %s23, 0
    %p128 = por %p126, %p127
    %p129 = scmp.ne.s32.totalorder %s117, %s118
    %p130 = scmp.eq.s32.totalorder %s24, 1
    %p131 = por %p129, %p130
    %p133 = scmp.ne.s32.totalorder %s118, %s132
    %p134 = scmp.eq.s32.totalorder %s24, 0
    %p135 = por %p133, %p134
    %s137 = sadd.s32 %s136, 1
    %p140 = scmp.eq.s32.totalorder %s18, 1
    %p141 = scmp.ne.s32.totalorder %s136, %s138
    %p142 = scmp.eq.s32.totalorder %s18, 0
    %p143 = por %p141, %p142
    %p144 = scmp.ne.s32.totalorder %s136, %s138
    %p145 = scmp.eq.s32.totalorder %s23, 1
    %p146 = por %p144, %p145
    %p147 = scmp.ne.s32.totalorder %s138, %s139
    %p148 = scmp.eq.s32.totalorder %s23, 0
    %p149 = por %p147, %p148
    %p150 = scmp.ne.s32.totalorder %s138, %s139
    %p151 = scmp.eq.s32.totalorder %s24, 1
    %p152 = por %p150, %p151
    %p154 = scmp.ne.s32.totalorder %s139, %s153
    %p155 = scmp.eq.s32.totalorder %s24, 0
    %p156 = por %p154, %p155
    %s158 = sadd.s32 %s157, 1
    %p161 = scmp.eq.s32.totalorder %s18, 1
    %p162 = scmp.ne.s32.totalorder %s157, %s159
    %p163 = scmp.eq.s32.totalorder %s18, 0
    %p164 = por %p162, %p163
    %p165 = scmp.ne.s32.totalorder %s157, %s159
    %p166 = scmp.eq.s32.totalorder %s23, 1
    %p167 = por %p165, %p166
    %p168 = scmp.ne.s32.totalorder %s159, %s160
    %p169 = scmp.eq.s32.totalorder %s23, 0
    %p170 = por %p168, %p169
    %p171 = scmp.ne.s32.totalorder %s159, %s160
    %p172 = scmp.eq.s32.totalorder %s24, 1
    %p173 = por %p171, %p172
    %p175 = scmp.ne.s32.totalorder %s160, %s174
    %p176 = scmp.eq.s32.totalorder %s24, 0
    %p177 = por %p175, %p176
    %s179 = sadd.s32 %s178, 1
    %p182 = scmp.eq.s32.totalorder %s18, 1
    %p183 = scmp.ne.s32.totalorder %s178, %s180
    %p184 = scmp.eq.s32.totalorder %s18, 0
    %p185 = por %p183, %p184
    %p186 = scmp.ne.s32.totalorder %s178, %s180
    %p187 = scmp.eq.s32.totalorder %s23, 1
    %p188 = por %p186, %p187
    %p189 = scmp.ne.s32.totalorder %s180, %s181
    %p190 = scmp.eq.s32.totalorder %s23, 0
    %p191 = por %p189, %p190
    %p192 = scmp.ne.s32.totalorder %s180, %s181
    %p193 = scmp.eq.s32.totalorder %s24, 1
    %p194 = por %p192, %p193
    %p196 = scmp.ne.s32.totalorder %s181, %s195
    %p197 = scmp.eq.s32.totalorder %s24, 0
    %p198 = por %p196, %p197
    %s200 = sadd.s32 %s199, 1
    %p203 = scmp.eq.s32.totalorder %s18, 1
    %p204 = scmp.ne.s32.totalorder %s199, %s201
    %p205 = scmp.eq.s32.totalorder %s18, 0
    %p206 = por %p204, %p205
    %p207 = scmp.ne.s32.totalorder %s199, %s201
    %p208 = scmp.eq.s32.totalorder %s23, 1
    %p209 = por %p207, %p208
    %p210 = scmp.ne.s32.totalorder %s201, %s202
    %p211 = scmp.eq.s32.totalorder %s23, 0
    %p212 = por %p210, %p211
    %p213 = scmp.ne.s32.totalorder %s201, %s202
    %p214 = scmp.eq.s32.totalorder %s24, 1
    %p215 = por %p213, %p214
    %p217 = scmp.ne.s32.totalorder %s202, %s216
    %p218 = scmp.eq.s32.totalorder %s24, 0
    %p219 = por %p217, %p218
    %s221 = sadd.s32 %s220, 1
    %p224 = scmp.eq.s32.totalorder %s18, 1
    %p225 = scmp.ne.s32.totalorder %s220, %s222
    %p226 = scmp.eq.s32.totalorder %s18, 0
    %p227 = por %p225, %p226
    %p228 = scmp.ne.s32.totalorder %s220, %s222
    %p229 = scmp.eq.s32.totalorder %s23, 1
    %p230 = por %p228, %p229
    %p231 = scmp.ne.s32.totalorder %s222, %s223
    %p232 = scmp.eq.s32.totalorder %s23, 0
    %p233 = por %p231, %p232
    %p234 = scmp.ne.s32.totalorder %s222, %s223
    %p235 = scmp.eq.s32.totalorder %s24, 1
    %p236 = por %p234, %p235
    %p238 = scmp.ne.s32.totalorder %s223, %s237
    %p239 = scmp.eq.s32.totalorder %s24, 0
    %p240 = por %p238, %p239
    %s242 = sadd.s32 %s241, 1
    %p245 = scmp.eq.s32.totalorder %s18, 1
    %p246 = scmp.ne.s32.totalorder %s241, %s243
    %p247 = scmp.eq.s32.totalorder %s18, 0
    %p248 = por %p246, %p247
    %p249 = scmp.ne.s32.totalorder %s241, %s243
    %p250 = scmp.eq.s32.totalorder %s23, 1
    %p251 = por %p249, %p250
    %p252 = scmp.ne.s32.totalorder %s243, %s244
    %p253 = scmp.eq.s32.totalorder %s23, 0
    %p254 = por %p252, %p253
    %p255 = scmp.ne.s32.totalorder %s243, %s244
    %p256 = scmp.eq.s32.totalorder %s24, 1
    %p257 = por %p255, %p256
    %p259 = scmp.ne.s32.totalorder %s244, %s258
    %p260 = scmp.eq.s32.totalorder %s24, 0
    %p261 = por %p259, %p260
    %s262 = ssub.s32 %s25, %s37
    %s263 = ssub.s32 %s26, %s33
    %s264 = sor.u32 %s262, %s263
    %p265 = scmp.eq.s32.totalorder %s264, 0
    %s267 = sadd.s32 %s266, 1
    %s268 = scalar_select %p265, %s266, %s267
    %p271 = pneg %p265
    %p272 = scmp.eq.s32.totalorder %s18, 1
    %p273 = por %p271, %p272
    %p274 = scmp.ne.s32.totalorder %s266, %s269
    %p275 = scmp.eq.s32.totalorder %s18, 0
    %p276 = por %p274, %p275
    %p277 = scmp.ne.s32.totalorder %s266, %s269
    %p278 = scmp.eq.s32.totalorder %s23, 1
    %p279 = por %p277, %p278
    %p280 = scmp.ne.s32.totalorder %s269, %s270
    %p281 = scmp.eq.s32.totalorder %s23, 0
    %p282 = por %p280, %p281
    %p283 = scmp.ne.s32.totalorder %s269, %s270
    %p284 = scmp.eq.s32.totalorder %s24, 1
    %p285 = por %p283, %p284
    %p287 = scmp.ne.s32.totalorder %s270, %s286
    %p288 = scmp.eq.s32.totalorder %s24, 0
    %p289 = por %p287, %p288
    %s290 = ssub.s32 %s25, %s37
    %s291 = ssub.s32 %s26, %s33
    %s292 = sor.u32 %s290, %s291
    %p293 = scmp.eq.s32.totalorder %s292, 0
    %s295 = sadd.s32 %s294, 1
    %s296 = scalar_select %p293, %s294, %s295
    %p299 = pneg %p293
    %p300 = scmp.eq.s32.totalorder %s18, 1
    %p301 = por %p299, %p300
    %p302 = scmp.ne.s32.totalorder %s294, %s297
    %p303 = scmp.eq.s32.totalorder %s18, 0
    %p304 = por %p302, %p303
    %p305 = scmp.ne.s32.totalorder %s294, %s297
    %p306 = scmp.eq.s32.totalorder %s23, 1
    %p307 = por %p305, %p306
    %p308 = scmp.ne.s32.totalorder %s297, %s298
    %p309 = scmp.eq.s32.totalorder %s23, 0
    %p310 = por %p308, %p309
    %p311 = scmp.ne.s32.totalorder %s297, %s298
    %p312 = scmp.eq.s32.totalorder %s24, 1
    %p313 = por %p311, %p312
    %p315 = scmp.ne.s32.totalorder %s298, %s314
    %p316 = scmp.eq.s32.totalorder %s24, 0
    %p317 = por %p315, %p316
    %p318 = scmp.le.s32.totalorder 1, %s18
    %p319 = scmp.lt.s32.totalorder %s18, 3
    %p320 = pnand %p318, %p319
    %p321 = pneg %p320
    // Predicated region
    $region9: #{unet_block_forward.3} parent=5 // pred_check
      _
    $region10: #{unet_block_forward.3} parent=5 // pred_check_branch
      %323 = sbr.rel (%p320) target = $region12
    $region11: #{unet_block_forward.3} parent=5 // pred_region
      %s324 = ssub.s32 %s18, 1
      // Predicated region
      $region13: #{unet_block_forward.3} parent=11 // pred_check
        %p325 = pneg %p107
      $region14: #{unet_block_forward.3} parent=11 // pred_check_branch
        %327 = sbr.rel (%p325) target = $region16
      $region15: #{unet_block_forward.3} parent=11 // pred_region
        _
      $region16: #{unet_block_forward.3} parent=11 // pred_fallthru
        _
      // Predicated region
      $region17: #{unet_block_forward.3} parent=11 // pred_check
        %p328 = pneg %p128
      $region18: #{unet_block_forward.3} parent=11 // pred_check_branch
        %330 = sbr.rel (%p328) target = $region20
      $region19: #{unet_block_forward.3} parent=11 // pred_region
        _
      $region20: #{unet_block_forward.3} parent=11 // pred_fallthru
        _
      // Predicated region
      $region21: #{unet_block_forward.3} parent=11 // pred_check
        %p331 = pneg %p149
      $region22: #{unet_block_forward.3} parent=11 // pred_check_branch
        %333 = sbr.rel (%p331) target = $region24
      $region23: #{unet_block_forward.3} parent=11 // pred_region
        _
      $region24: #{unet_block_forward.3} parent=11 // pred_fallthru
        _
      // Predicated region
      $region25: #{unet_block_forward.3} parent=11 // pred_check
        %p334 = pneg %p170
      $region26: #{unet_block_forward.3} parent=11 // pred_check_branch
        %336 = sbr.rel (%p334) target = $region28
      $region27: #{unet_block_forward.3} parent=11 // pred_region
        _
      $region28: #{unet_block_forward.3} parent=11 // pred_fallthru
        _
      // Predicated region
      $region29: #{unet_block_forward.3} parent=11 // pred_check
        %p337 = pneg %p191
      $region30: #{unet_block_forward.3} parent=11 // pred_check_branch
        %339 = sbr.rel (%p337) target = $region32
      $region31: #{unet_block_forward.3} parent=11 // pred_region
        _
      $region32: #{unet_block_forward.3} parent=11 // pred_fallthru
        _
      // Predicated region
      $region33: #{unet_block_forward.3} parent=11 // pred_check
        %p340 = pneg %p212
      $region34: #{unet_block_forward.3} parent=11 // pred_check_branch
        %342 = sbr.rel (%p340) target = $region36
      $region35: #{unet_block_forward.3} parent=11 // pred_region
        _
      $region36: #{unet_block_forward.3} parent=11 // pred_fallthru
        _
      // Predicated region
      $region37: #{unet_block_forward.3} parent=11 // pred_check
        %p343 = pneg %p233
      $region38: #{unet_block_forward.3} parent=11 // pred_check_branch
        %345 = sbr.rel (%p343) target = $region40
      $region39: #{unet_block_forward.3} parent=11 // pred_region
        _
      $region40: #{unet_block_forward.3} parent=11 // pred_fallthru
        _
      // Predicated region
      $region41: #{unet_block_forward.3} parent=11 // pred_check
        %p346 = pneg %p254
      $region42: #{unet_block_forward.3} parent=11 // pred_check_branch
        %348 = sbr.rel (%p346) target = $region44
      $region43: #{unet_block_forward.3} parent=11 // pred_region
        _
      $region44: #{unet_block_forward.3} parent=11 // pred_fallthru
        _
    $region12: #{unet_block_forward.3} parent=5 // pred_fallthru
      _
    %p349 = scmp.lt.s32.totalorder %s18, 2
    // Predicated region
    $region45: #{unet_block_forward.3} parent=5 // pred_check
      %p350 = pneg %p349
    $region46: #{unet_block_forward.3} parent=5 // pred_check_branch
      %352 = sbr.rel (%p350) target = $region48
    $region47: #{unet_block_forward.3} parent=5 // pred_region
      // Predicated region
      $region49: #{unet_block_forward.3} parent=47 // pred_check
        %p353 = pneg %p52
      $region50: #{unet_block_forward.3} parent=47 // pred_check_branch
        %355 = sbr.rel (%p353) target = $region52
      $region51: #{unet_block_forward.3} parent=47 // pred_region
        %s356 = smul.u32 2, %s26
        %p357 = scmp.lt.s32.totalorder %s25, 1
        %s358 = scalar_select %p357, %s25, 1
        %p359 = scmp.lt.s32.totalorder %s356, 1
        %s360 = scalar_select %p359, %s356, 1
        %s361 = smul.addr %s358, 2
        %s362 = sadd.s32 %s360, %s361
        %s363 = smul.addr %s362, 4
        %s364 = scalar_lea.vmem %s0, %s363
        %s365 = smul.u32 2, %s26
      $region52: #{unet_block_forward.3} parent=47 // pred_fallthru
        _
      // Predicated region
      $region53: #{unet_block_forward.3} parent=47 // pred_check
        %p366 = pneg %p80
      $region54: #{unet_block_forward.3} parent=47 // pred_check_branch
        %368 = sbr.rel (%p366) target = $region56
      $region55: #{unet_block_forward.3} parent=47 // pred_region
        %s369 = smul.u32 8, %s26
        %p370 = scmp.lt.s32.totalorder %s25, 1
        %s371 = scalar_select %p370, %s25, 1
        %p372 = scmp.lt.s32.totalorder %s369, 7
        %s373 = scalar_select %p372, %s369, 7
        %s374 = smul.addr %s371, 8
        %s375 = sadd.s32 %s373, %s374
        %s376 = smul.addr %s375, 4
        %s377 = scalar_lea.vmem %s1, %s376
        %s378 = smul.u32 8, %s26
      $region56: #{unet_block_forward.3} parent=47 // pred_fallthru
        _
    $region48: #{unet_block_forward.3} parent=5 // pred_fallthru
      _
    %p379 = scmp.le.s32.totalorder 1, %s18
    %p380 = scmp.lt.s32.totalorder %s18, 3
    %p381 = pnand %p379, %p380
    %p382 = pneg %p381
    // Predicated region
    $region57: #{unet_block_forward.3} parent=5 // pred_check
      _
    $region58: #{unet_block_forward.3} parent=5 // pred_check_branch
      %384 = sbr.rel (%p381) target = $region60
    $region59: #{unet_block_forward.3} parent=5 // pred_region
      %s385 = ssub.s32 %s18, 1
      %s386 = smul.u32 2, %s28
      %p387 = scmp.lt.s32.totalorder %s27, 1
      %s388 = scalar_select %p387, %s27, 1
      %p389 = scmp.lt.s32.totalorder %s386, 1
      %s390 = scalar_select %p389, %s386, 1
      %s391 = smul.addr %s388, 2
      %s392 = sadd.s32 %s390, %s391
      %s393 = smul.addr %s392, 4
      %s394 = scalar_lea.vmem %s0, %s393
      %p395 = pneg %p58
      %p396 = pneg %p55
      %s397 = smul.u32 8, %s28
      %p398 = scmp.lt.s32.totalorder %s27, 1
      %s399 = scalar_select %p398, %s27, 1
      %p400 = scmp.lt.s32.totalorder %s397, 7
      %s401 = scalar_select %p400, %s397, 7
      %s402 = smul.addr %s399, 8
      %s403 = sadd.s32 %s401, %s402
      %s404 = smul.addr %s403, 4
      %s405 = scalar_lea.vmem %s1, %s404
      %p406 = pneg %p86
      %p407 = pneg %p83
      %p408 = pneg %p107
      %p409 = pneg %p104
      %p410 = pneg %p128
      %p411 = pneg %p125
      %p412 = pneg %p149
      %p413 = pneg %p146
      %p414 = pneg %p170
      %p415 = pneg %p167
      %p416 = pneg %p191
      %p417 = pneg %p188
      %p418 = pneg %p212
      %p419 = pneg %p209
      %p420 = pneg %p233
      %p421 = pneg %p230
      %p422 = pneg %p254
      %p423 = pneg %p251
      %p424 = pneg %p282
      %p425 = pneg %p279
      %s426 = smul.u32 2, %s28
      %p427 = scmp.lt.s32.totalorder %s27, 1
      %s428 = scalar_select %p427, %s27, 1
      %p429 = scmp.lt.s32.totalorder %s426, 1
      %s430 = scalar_select %p429, %s426, 1
      %s431 = smul.addr %s428, 4
      %s432 = sadd.s32 %s430, %s431
      %s433 = smul.addr %s432, 4
      %s434 = scalar_lea.vmem %s10, %s433
      %p435 = pneg %p310
      %p436 = pneg %p307
      %s437 = smul.u32 8, %s28
      %p438 = scmp.lt.s32.totalorder %s27, 1
      %s439 = scalar_select %p438, %s27, 1
      %p440 = scmp.lt.s32.totalorder %s437, 7
      %s441 = scalar_select %p440, %s437, 7
      %s442 = smul.addr %s439, 8
      %s443 = sadd.s32 %s441, %s442
      %s444 = smul.addr %s443, 2
      %s445 = scalar_lea.vmem %s11, %s444
      %s446 = smul.u32 2, %s28
      %p447 = scmp.lt.s32.totalorder %s27, 1
      %s448 = scalar_select %p447, %s27, 1
      %p449 = scmp.lt.s32.totalorder %s446, 1
      %s450 = scalar_select %p449, %s446, 1
      %s451 = smul.addr %s448, 2
      %s452 = sadd.s32 %s450, %s451
      %s453 = smul.addr %s452, 4
      %s454 = scalar_lea.vmem %s0, %s453
      %s455 = smul.u32 2, %s28
      %s456 = smul.u32 8, %s28
      %p457 = scmp.lt.s32.totalorder %s27, 1
      %s458 = scalar_select %p457, %s27, 1
      %p459 = scmp.lt.s32.totalorder %s456, 7
      %s460 = scalar_select %p459, %s456, 7
      %s461 = smul.addr %s458, 8
      %s462 = sadd.s32 %s460, %s461
      %s463 = smul.addr %s462, 4
      %s464 = scalar_lea.vmem %s1, %s463
      %s465 = smul.u32 8, %s28
      %s466 = smul.u32 2, %s28
      %p467 = scmp.lt.s32.totalorder %s27, 1
      %s468 = scalar_select %p467, %s27, 1
      %p469 = scmp.lt.s32.totalorder %s466, 1
      %s470 = scalar_select %p469, %s466, 1
      %s471 = smul.addr %s468, 4
      %s472 = sadd.s32 %s470, %s471
      %s473 = smul.addr %s472, 4
      %s474 = scalar_lea.vmem %s10, %s473
      %s475 = smul.u32 2, %s28
      %s476 = smul.u32 8, %s28
      %p477 = scmp.lt.s32.totalorder %s27, 1
      %s478 = scalar_select %p477, %s27, 1
      %p479 = scmp.lt.s32.totalorder %s476, 7
      %s480 = scalar_select %p479, %s476, 7
      %s481 = smul.addr %s478, 8
      %s482 = sadd.s32 %s480, %s481
      %s483 = smul.addr %s482, 2
      %s484 = scalar_lea.vmem %s11, %s483
      %s485 = smul.u32 8, %s28
      %v487 = vld [vmem:[%s2] sm:$0xf]
      %v488 = vld [vmem:[%s2 + $0x4] sm:$0xf]
      %v489 = vld [vmem:[%s454] sm:$0xff]
      %491 = vst [vmem:[#allocation1] ss:$2 sm:$0xff] %v489
      %v492 = vld.sshfl [vmem:[#allocation1] sm:$0xff pattern:$0x75316420]
      %v493 = vld.sshfl [vmem:[#allocation1 + $0x8] sm:$0xff pattern:$0x75316420]
      %v496 = vpack.c.bf16 %v492, %v492
      %v497 = vpack.c.bf16 %v493, %v493
      %v498 = vld [vmem:[%s3] sm:$0xff]
      %v499 = vld [vmem:[%s3 + $0x8] sm:$0xff]
      %501 = vset.pattern.permute.xlu0 0
      %502 = vperm.xlu0 %501, %v498
      %v503 = vpop.permute.xlu0 %502
      %506 = vset.pattern.permute.xlu0 0
      %507 = vperm.xlu0 %506, %v499
      %v508 = vpop.permute.xlu0 %507
      %v512 = vunpack.c.l.b16 %v487
      %v513 = vunpack.c.l.b16 %v488
      %v514 = vpack.c.b16 %v513, %v512
      %vm515 = vcmask 31744
      %v517 = vsel %vm515, %v514, 0
      %vm519 = vcmask 1041408
      %v521 = vsel %vm519, %v496, 0
      %v524 = vsel %vm519, %v497, 0
      %526 = vmatpush.bf16.msra.mxu0 0
      %527 = vmatpush.bf16.msra.mxu0 0
      %528 = vmatpush.bf16.msra.mxu0 0
      %529 = vmatpush.bf16.msra.mxu0 0
      %530 = vmatpush.bf16.msra.mxu0 0
      %531 = vmatpush.bf16.msra.mxu0 0
      %532 = vmatpush.bf16.msra.mxu0 0
      %533 = vmatpush.bf16.msra.mxu0 %v521
      %534 = vmatmul.bf16.gmra.mxu0 %v517
      %v535 = vpop.f32.mrf.mxu0
      %v536 = vadd.f32 %v503, %v535
      %v537 = vpop.f32.mrf.mxu0
      %v538 = vadd.f32 %v508, %v537
      %539 = vdwg.mxu0
      %540 = vmatpush.bf16.msra.mxu0 0
      %541 = vmatpush.bf16.msra.mxu0 0
      %542 = vmatpush.bf16.msra.mxu0 0
      %543 = vmatpush.bf16.msra.mxu0 0
      %544 = vmatpush.bf16.msra.mxu0 0
      %545 = vmatpush.bf16.msra.mxu0 0
      %546 = vmatpush.bf16.msra.mxu0 0
      %547 = vmatpush.bf16.msra.mxu0 %v524
      %548 = vmatmul.bf16.gmra.mxu0 %v517
      %v549 = vpop.f32.mrf.mxu0
      %v550 = vadd.f32 %v503, %v549
      %v551 = vpop.f32.mrf.mxu0
      %v552 = vadd.f32 %v508, %v551
      %553 = vdwg.mxu0
      %v554 = vmax.f32 %v536, 0.0
      %v555 = vmax.f32 %v550, 0.0
      %v556 = vmax.f32 %v538, 0.0
      %v557 = vmax.f32 %v552, 0.0
      %v558 = vld [vmem:[%s6] sm:$0xff]
      %v559 = vld [vmem:[%s6 + $0x8] sm:$0xff]
      %561 = vset.pattern.permute.xlu0 0
      %562 = vperm.xlu0 %561, %v558
      %v563 = vpop.permute.xlu0 %562
      %566 = vset.pattern.permute.xlu0 0
      %567 = vperm.xlu0 %566, %v559
      %v568 = vpop.permute.xlu0 %567
      %v570 = vmul.f32 %v554, %v563
      %v571 = vmul.f32 %v555, %v563
      %v572 = vmul.f32 %v556, %v568
      %v573 = vmul.f32 %v557, %v568
      %v574 = vld [vmem:[%s7] sm:$0xff]
      %v575 = vld [vmem:[%s7 + $0x8] sm:$0xff]
      %577 = vset.pattern.permute.xlu0 0
      %578 = vperm.xlu0 %577, %v574
      %v579 = vpop.permute.xlu0 %578
      %582 = vset.pattern.permute.xlu0 0
      %583 = vperm.xlu0 %582, %v575
      %v584 = vpop.permute.xlu0 %583
      %v586 = vadd.f32 %v570, %v579
      %v587 = vadd.f32 %v571, %v579
      %v588 = vadd.f32 %v572, %v584
      %v589 = vadd.f32 %v573, %v584
      %v590 = vpack.c.bf16 %v587, %v586
      %v591 = vpack.c.bf16 %v589, %v588
      %592 = vst [vmem:[%s474] sm:$0xff] %v590
      %593 = vst [vmem:[%s474 + $0x8] sm:$0xff] %v591
      %v594 = vld [vmem:[%s4] sm:$0x3]
      %v595 = vld [vmem:[%s464] sm:$0xff]
      %v596 = vld [vmem:[%s464 + $0x8] sm:$0xff]
      %v597 = vld [vmem:[%s464 + $0x10] sm:$0xff]
      %v598 = vld [vmem:[%s464 + $0x18] sm:$0xff]
      %603 = vst [vmem:[#allocation1] ss:$2 sm:$0xff] %v595
      %s604 = scalar_lea.vmem [#allocation1], 16
      %605 = vst [vmem:[%s604] ss:$2 sm:$0xff] %v596
      %s606 = scalar_lea.vmem [#allocation1], 32
      %607 = vst [vmem:[%s606] ss:$2 sm:$0xff] %v597
      %s608 = scalar_lea.vmem [#allocation1], 48
      %609 = vst [vmem:[%s608] ss:$2 sm:$0xff] %v598
      %v610 = vld.sshfl [vmem:[#allocation1] sm:$0xff pattern:$0x75316420]
      %v611 = vld.sshfl [vmem:[#allocation1 + $0x8] sm:$0xff pattern:$0x75316420]
      %v612 = vld.sshfl [vmem:[#allocation1 + $0x10] sm:$0xff pattern:$0x75316420]
      %v613 = vld.sshfl [vmem:[#allocation1 + $0x18] sm:$0xff pattern:$0x75316420]
      %v614 = vld.sshfl [vmem:[#allocation1 + $0x20] sm:$0xff pattern:$0x75316420]
      %v615 = vld.sshfl [vmem:[#allocation1 + $0x28] sm:$0xff pattern:$0x75316420]
      %v616 = vld.sshfl [vmem:[#allocation1 + $0x30] sm:$0xff pattern:$0x75316420]
      %v617 = vld.sshfl [vmem:[#allocation1 + $0x38] sm:$0xff pattern:$0x75316420]
      %v626 = vpack.c.bf16 %v610, %v610
      %v627 = vpack.c.bf16 %v611, %v611
      %v628 = vpack.c.bf16 %v612, %v612
      %v629 = vpack.c.bf16 %v613, %v613
      %v630 = vpack.c.bf16 %v614, %v614
      %v631 = vpack.c.bf16 %v615, %v615
      %v632 = vpack.c.bf16 %v616, %v616
      %v633 = vpack.c.bf16 %v617, %v617
      %v634 = vld [vmem:[%s5] sm:$0xf]
      %636 = vset.pattern.permute.xlu0 0
      %637 = vperm.xlu0 %636, %v634
      %v638 = vpop.permute.xlu0 %637
      %v641 = vsel %vm515, %v594, 0
      %v644 = vsel %vm519, %v626, 0
      %v647 = vsel %vm519, %v627, 0
      %v650 = vsel %vm519, %v628, 0
      %v653 = vsel %vm519, %v629, 0
      %v656 = vsel %vm519, %v630, 0
      %v659 = vsel %vm519, %v631, 0
      %v662 = vsel %vm519, %v632, 0
      %v665 = vsel %vm519, %v633, 0
      %667 = vmatpush.bf16.msra.mxu0 0
      %668 = vmatpush.bf16.msra.mxu0 0
      %669 = vmatpush.bf16.msra.mxu0 0
      %670 = vmatpush.bf16.msra.mxu0 0
      %671 = vmatpush.bf16.msra.mxu0 0
      %672 = vmatpush.bf16.msra.mxu0 0
      %673 = vmatpush.bf16.msra.mxu0 0
      %674 = vmatpush.bf16.msra.mxu0 %v644
      %675 = vmatmul.bf16.gmra.mxu0 %v641
      %v676 = vpop.f32.mrf.mxu0
      %v677 = vadd.f32 %v638, %v676
      %v678 = vpop.f32.mrf.mxu0
      %679 = vdwg.mxu0
      %680 = vmatpush.bf16.msra.mxu0 0
      %681 = vmatpush.bf16.msra.mxu0 0
      %682 = vmatpush.bf16.msra.mxu0 0
      %683 = vmatpush.bf16.msra.mxu0 0
      %684 = vmatpush.bf16.msra.mxu0 0
      %685 = vmatpush.bf16.msra.mxu0 0
      %686 = vmatpush.bf16.msra.mxu0 0
      %687 = vmatpush.bf16.msra.mxu0 %v647
      %688 = vmatmul.bf16.gmra.mxu0 %v641
      %v689 = vpop.f32.mrf.mxu0
      %v690 = vadd.f32 %v638, %v689
      %v691 = vpop.f32.mrf.mxu0
      %692 = vdwg.mxu0
      %693 = vmatpush.bf16.msra.mxu0 0
      %694 = vmatpush.bf16.msra.mxu0 0
      %695 = vmatpush.bf16.msra.mxu0 0
      %696 = vmatpush.bf16.msra.mxu0 0
      %697 = vmatpush.bf16.msra.mxu0 0
      %698 = vmatpush.bf16.msra.mxu0 0
      %699 = vmatpush.bf16.msra.mxu0 0
      %700 = vmatpush.bf16.msra.mxu0 %v650
      %701 = vmatmul.bf16.gmra.mxu0 %v641
      %v702 = vpop.f32.mrf.mxu0
      %v703 = vadd.f32 %v638, %v702
      %v704 = vpop.f32.mrf.mxu0
      %705 = vdwg.mxu0
      %706 = vmatpush.bf16.msra.mxu0 0
      %707 = vmatpush.bf16.msra.mxu0 0
      %708 = vmatpush.bf16.msra.mxu0 0
      %709 = vmatpush.bf16.msra.mxu0 0
      %710 = vmatpush.bf16.msra.mxu0 0
      %711 = vmatpush.bf16.msra.mxu0 0
      %712 = vmatpush.bf16.msra.mxu0 0
      %713 = vmatpush.bf16.msra.mxu0 %v653
      %714 = vmatmul.bf16.gmra.mxu0 %v641
      %v715 = vpop.f32.mrf.mxu0
      %v716 = vadd.f32 %v638, %v715
      %v717 = vpop.f32.mrf.mxu0
      %718 = vdwg.mxu0
      %719 = vmatpush.bf16.msra.mxu0 0
      %720 = vmatpush.bf16.msra.mxu0 0
      %721 = vmatpush.bf16.msra.mxu0 0
      %722 = vmatpush.bf16.msra.mxu0 0
      %723 = vmatpush.bf16.msra.mxu0 0
      %724 = vmatpush.bf16.msra.mxu0 0
      %725 = vmatpush.bf16.msra.mxu0 0
      %726 = vmatpush.bf16.msra.mxu0 %v656
      %727 = vmatmul.bf16.gmra.mxu0 %v641
      %v728 = vpop.f32.mrf.mxu0
      %v729 = vadd.f32 %v638, %v728
      %v730 = vpop.f32.mrf.mxu0
      %731 = vdwg.mxu0
      %732 = vmatpush.bf16.msra.mxu0 0
      %733 = vmatpush.bf16.msra.mxu0 0
      %734 = vmatpush.bf16.msra.mxu0 0
      %735 = vmatpush.bf16.msra.mxu0 0
      %736 = vmatpush.bf16.msra.mxu0 0
      %737 = vmatpush.bf16.msra.mxu0 0
      %738 = vmatpush.bf16.msra.mxu0 0
      %739 = vmatpush.bf16.msra.mxu0 %v659
      %740 = vmatmul.bf16.gmra.mxu0 %v641
      %v741 = vpop.f32.mrf.mxu0
      %v742 = vadd.f32 %v638, %v741
      %v743 = vpop.f32.mrf.mxu0
      %744 = vdwg.mxu0
      %745 = vmatpush.bf16.msra.mxu0 0
      %746 = vmatpush.bf16.msra.mxu0 0
      %747 = vmatpush.bf16.msra.mxu0 0
      %748 = vmatpush.bf16.msra.mxu0 0
      %749 = vmatpush.bf16.msra.mxu0 0
      %750 = vmatpush.bf16.msra.mxu0 0
      %751 = vmatpush.bf16.msra.mxu0 0
      %752 = vmatpush.bf16.msra.mxu0 %v662
      %753 = vmatmul.bf16.gmra.mxu0 %v641
      %v754 = vpop.f32.mrf.mxu0
      %v755 = vadd.f32 %v638, %v754
      %v756 = vpop.f32.mrf.mxu0
      %757 = vdwg.mxu0
      %758 = vmatpush.bf16.msra.mxu0 0
      %759 = vmatpush.bf16.msra.mxu0 0
      %760 = vmatpush.bf16.msra.mxu0 0
      %761 = vmatpush.bf16.msra.mxu0 0
      %762 = vmatpush.bf16.msra.mxu0 0
      %763 = vmatpush.bf16.msra.mxu0 0
      %764 = vmatpush.bf16.msra.mxu0 0
      %765 = vmatpush.bf16.msra.mxu0 %v665
      %766 = vmatmul.bf16.gmra.mxu0 %v641
      %v767 = vpop.f32.mrf.mxu0
      %v768 = vadd.f32 %v638, %v767
      %v769 = vpop.f32.mrf.mxu0
      %770 = vdwg.mxu0
      %v771 = vmax.f32 %v677, 0.0
      %v772 = vmax.f32 %v690, 0.0
      %v773 = vmax.f32 %v703, 0.0
      %v774 = vmax.f32 %v716, 0.0
      %v775 = vmax.f32 %v729, 0.0
      %v776 = vmax.f32 %v742, 0.0
      %v777 = vmax.f32 %v755, 0.0
      %v778 = vmax.f32 %v768, 0.0
      %v779 = vld [vmem:[%s8] sm:$0xf]
      %781 = vset.pattern.permute.xlu0 0
      %782 = vperm.xlu0 %781, %v779
      %v783 = vpop.permute.xlu0 %782
      %v785 = vmul.f32 %v771, %v783
      %v786 = vmul.f32 %v772, %v783
      %v787 = vmul.f32 %v773, %v783
      %v788 = vmul.f32 %v774, %v783
      %v789 = vmul.f32 %v775, %v783
      %v790 = vmul.f32 %v776, %v783
      %v791 = vmul.f32 %v777, %v783
      %v792 = vmul.f32 %v778, %v783
      %v793 = vld [vmem:[%s9] sm:$0xf]
      %795 = vset.pattern.permute.xlu0 0
      %796 = vperm.xlu0 %795, %v793
      %v797 = vpop.permute.xlu0 %796
      %v799 = vadd.f32 %v785, %v797
      %v800 = vadd.f32 %v786, %v797
      %v801 = vadd.f32 %v787, %v797
      %v802 = vadd.f32 %v788, %v797
      %v803 = vadd.f32 %v789, %v797
      %v804 = vadd.f32 %v790, %v797
      %v805 = vadd.f32 %v791, %v797
      %v806 = vadd.f32 %v792, %v797
      %v807 = vpack.c.bf16 %v800, %v799
      %v808 = vpack.c.bf16 %v802, %v801
      %v809 = vpack.c.bf16 %v804, %v803
      %v810 = vpack.c.bf16 %v806, %v805
      %v815 = vrot.slane %v807, 2
      %v816 = vrot.slane %v808, 4
      %v817 = vrot.slane %v808, 6
      %v818 = vrot.slane %v809, 2
      %v819 = vrot.slane %v810, 4
      %v820 = vrot.slane %v810, 6
      %v823 = vsel %vm519, %v807, %v815
      %vm824 = vcmask 1045508
      %v827 = vsel %vm824, %v816, %v817
      %vm828 = vcmask 1043456
      %v829 = vsel %vm828, %v823, %v827
      %v832 = vsel %vm519, %v809, %v818
      %v835 = vsel %vm824, %v819, %v820
      %v836 = vsel %vm828, %v832, %v835
      %839 = vst [vmem:[%s484] sm:$0xff] %v829
      %840 = vst [vmem:[%s484 + $0x8] sm:$0xff] %v836
      %s841 = smul.u32 2, %s28
      %p842 = scmp.lt.s32.totalorder %s27, 1
      %s843 = scalar_select %p842, %s27, 1
      %p844 = scmp.lt.s32.totalorder %s841, 1
      %s845 = scalar_select %p844, %s841, 1
      %s846 = smul.addr %s843, 4
      %s847 = sadd.s32 %s845, %s846
      %s848 = smul.addr %s847, 4
      %s849 = scalar_lea.vmem %s10, %s848
      %s850 = smul.u32 8, %s28
      %p851 = scmp.lt.s32.totalorder %s27, 1
      %s852 = scalar_select %p851, %s27, 1
      %p853 = scmp.lt.s32.totalorder %s850, 7
      %s854 = scalar_select %p853, %s850, 7
      %s855 = smul.addr %s852, 8
      %s856 = sadd.s32 %s854, %s855
      %s857 = smul.addr %s856, 2
      %s858 = scalar_lea.vmem %s11, %s857
      // Predicated region
      $region61: #{unet_block_forward.3} parent=59 // pred_check
        %p859 = pneg %p279
      $region62: #{unet_block_forward.3} parent=59 // pred_check_branch
        %861 = sbr.rel (%p859) target = $region64
      $region63: #{unet_block_forward.3} parent=59 // pred_region
        %s862 = smul.u32 2, %s28
      $region64: #{unet_block_forward.3} parent=59 // pred_fallthru
        _
      // Predicated region
      $region65: #{unet_block_forward.3} parent=59 // pred_check
        %p863 = pneg %p307
      $region66: #{unet_block_forward.3} parent=59 // pred_check_branch
        %865 = sbr.rel (%p863) target = $region68
      $region67: #{unet_block_forward.3} parent=59 // pred_region
        %s866 = smul.u32 8, %s28
      $region68: #{unet_block_forward.3} parent=59 // pred_fallthru
        _
    $region60: #{unet_block_forward.3} parent=5 // pred_fallthru
      _
    %p867 = scmp.le.s32.totalorder 2, %s18
    // Predicated region
    $region69: #{unet_block_forward.3} parent=5 // pred_check
      %p868 = pneg %p867
    $region70: #{unet_block_forward.3} parent=5 // pred_check_branch
      %870 = sbr.rel (%p868) target = $region72
    $region71: #{unet_block_forward.3} parent=5 // pred_region
      %s871 = ssub.s32 %s18, 2
      // Predicated region
      $region73: #{unet_block_forward.3} parent=71 // pred_check
        %p872 = pneg %p285
      $region74: #{unet_block_forward.3} parent=71 // pred_check_branch
        %874 = sbr.rel (%p872) target = $region76
      $region75: #{unet_block_forward.3} parent=71 // pred_region
        %s875 = smul.u32 2, %s30
        %p876 = scmp.lt.s32.totalorder %s29, 1
        %s877 = scalar_select %p876, %s29, 1
        %p878 = scmp.lt.s32.totalorder %s875, 1
        %s879 = scalar_select %p878, %s875, 1
        %s880 = smul.addr %s877, 4
        %s881 = sadd.s32 %s879, %s880
        %s882 = smul.addr %s881, 4
        %s883 = scalar_lea.vmem %s10, %s882
      $region76: #{unet_block_forward.3} parent=71 // pred_fallthru
        _
      // Predicated region
      $region77: #{unet_block_forward.3} parent=71 // pred_check
        %p884 = pneg %p313
      $region78: #{unet_block_forward.3} parent=71 // pred_check_branch
        %886 = sbr.rel (%p884) target = $region80
      $region79: #{unet_block_forward.3} parent=71 // pred_region
        %s887 = smul.u32 8, %s30
        %p888 = scmp.lt.s32.totalorder %s29, 1
        %s889 = scalar_select %p888, %s29, 1
        %p890 = scmp.lt.s32.totalorder %s887, 7
        %s891 = scalar_select %p890, %s887, 7
        %s892 = smul.addr %s889, 8
        %s893 = sadd.s32 %s891, %s892
        %s894 = smul.addr %s893, 2
        %s895 = scalar_lea.vmem %s11, %s894
      $region80: #{unet_block_forward.3} parent=71 // pred_fallthru
        _
    $region72: #{unet_block_forward.3} parent=5 // pred_fallthru
      _
  $region6: #{unet_block_forward.3} parent=0 // loop_footer
    %s22 = sadd.s32 1, %s18
  $region7: #{unet_block_forward.3} parent=0 // loop_footer_branch
    %17 = sbr.rel target = $region3
  $region8: #{unet_block_forward.3} parent=0 // loop_exit
    _

</llo_original>
